<compile_context>
chip_gen: v6e
topology: v6e:2x2x1
jax: 0.10.0
libtpu: 0.0.40
codegen_flags: <defaults>
</compile_context>

<pallas_src>
import jax
import jax.numpy as jnp
from jax.experimental import pallas as pl
from jax.experimental.pallas import tpu as pltpu

HIDDEN = 32    # hidden_channels
IN_CH = 3      # node feature dim for 'gene' and 'cell'
EDGE_H = 32    # edge_nn hidden width (Lin(1, 32))
_LANES = 128   # lane-dense output width

# ---- packed parameter slab layout (all column-0 aligned; cols 0:32 unless noted) ----
_P_WL_GG, _P_BL_GG, _P_WR_GG = 0, 3, 4
_P_WL_CC, _P_BL_CC, _P_WR_CC = 7, 10, 11
_P_W1, _P_B1 = 14, 15
_P_WROOT_CG, _P_BIAS_CG = 16, 19
_P_WROOT_GC, _P_BIAS_GC = 20, 23
_P_WRO_G, _P_BRO_G = 24, 56
_P_WRO_C, _P_BRO_C = 57, 89
_P_W2, _P_B2 = 90, 122          # cols 0:96
_P_ROWS, _P_COLS = 123, 96

_RELATIONS = (
    ('gene', 'interacts', 'gene'),
    ('cell', 'interacts', 'cell'),
    ('cell', 'expresses', 'gene'),
    ('gene', 'expressed_in', 'cell'),
)


def _round_up(x, m):
    return ((x + m - 1) // m) * m


def _logsigmoid(x):
    # numerically stable log(sigmoid(x)); exp/log hit the EUP slot
    return jnp.minimum(x, 0.0) - jnp.log1p(jnp.exp(-jnp.abs(x)))


def _fma_matmul(x, w):
    """(N, C) @ (C, H) with tiny C computed as C VPU FMAs (avoids a K=C MXU pass)."""
    acc = x[:, 0:1] * w[0:1, :]
    for k in range(1, x.shape[1]):
        acc = acc + x[:, k:k + 1] * w[k:k + 1, :]
    return acc


# ---------------------------------------------------------------------------
# The single fused kernel (closure over static graph geometry)
# ---------------------------------------------------------------------------
def _make_dgi_kernel(n_gene, n_cell, n_pad, e_pads):
    e_gg, e_cc, e_cg, e_gc = e_pads          # per-relation edge counts, padded to x8
    off_cc = e_gg
    off_cg = e_gg + e_cc
    off_gc = off_cg + e_cg
    e_nn = e_cg + e_gc
    f32, bf16 = jnp.float32, jnp.bfloat16
    H, C = HIDDEN, IN_CH

    def kernel(xg_ref, xc_ref, edge_ref, dst_ref, p_ref, loss_ref, z_ref):
        # ---- unpack the single packed parameter slab (static, col-0-aligned slices) ----
        def p32(r0, nrows=1):
            return p_ref[r0:r0 + nrows, 0:H]
        wl_gg, bl_gg, wr_gg = p32(_P_WL_GG, C), p32(_P_BL_GG), p32(_P_WR_GG, C)
        wl_cc, bl_cc, wr_cc = p32(_P_WL_CC, C), p32(_P_BL_CC), p32(_P_WR_CC, C)
        w1, b1 = p32(_P_W1), p32(_P_B1)
        wroot_cg, bias_cg = p32(_P_WROOT_CG, C), p32(_P_BIAS_CG)
        wroot_gc, bias_gc = p32(_P_WROOT_GC, C), p32(_P_BIAS_GC)
        wro_g, bro_g = p32(_P_WRO_G, H), p32(_P_BRO_G)
        wro_c, bro_c = p32(_P_WRO_C, H), p32(_P_BRO_C)
        w2 = p_ref[_P_W2:_P_W2 + EDGE_H, 0:C * H]        # (32, 96)
        b2 = p_ref[_P_B2:_P_B2 + 1, 0:C * H]             # (1, 96)

        xg = xg_ref[...]        # (n_gene, 6): cols 0:3 positive, 3:6 corrupted
        xc = xc_ref[...]        # (n_cell, 6)
        edge = edge_ref[...]    # (e_tot, 7): 0:3 pos src feats, 3:6 neg src feats, 6 edge attr

        # ---- scatter-mean structure per relation: exact 0/1 incidence in bf16
        #      (MXU operand), 1/deg kept separate in f32 (EUP reciprocal, VPU scale) ----
        def scatter_mean(rel, n_dst, e_pad):
            dst = dst_ref[rel:rel + 1, 0:e_pad]                              # (1, e_pad) int32
            rows = jax.lax.broadcasted_iota(jnp.int32, (n_dst, e_pad), 0)
            a01f = (rows == dst).astype(f32)                                 # padded edges: dst=-1 -> 0
            deg = jnp.sum(a01f, axis=1, keepdims=True)
            inv_deg = pl.reciprocal(jnp.maximum(deg, 1.0), approx=True)
            return a01f.astype(bf16), inv_deg

        a_gg, d_gg = scatter_mean(0, n_gene, e_gg)
        a_cc, d_cc = scatter_mean(1, n_cell, e_cc)
        a_cg, d_cg = scatter_mean(2, n_gene, e_cg)
        a_gc, d_gc = scatter_mean(3, n_cell, e_gc)

        def agg_mean(a01, inv_deg, msg):
            # bf16 x bf16 MXU with f32 accumulate; mean applied as f32 column scale after
            s = jnp.dot(a01, msg.astype(bf16), preferred_element_type=f32)
            return s * inv_deg

        # ---- shared edge_nn evaluated ONCE over the concatenated [cg | gc] edge attrs ----
        ea = edge[off_cg:off_cg + e_nn, 6:7]                                  # (e_nn, 1)
        hid = jnp.maximum(ea * w1 + b1, 0.0)                                  # (e_nn, 32) VPU
        wf_all = jnp.dot(hid, w2, preferred_element_type=f32) + b2            # (e_nn, 96)
        wf = [wf_all[:, c * H:(c + 1) * H] for c in range(C)]                 # W_e[c, :]
        wf_cg = [w[0:e_cg] for w in wf]
        wf_gc = [w[e_cg:e_nn] for w in wf]

        def fused_pair(fn, x6):
            # apply fn to positive (cols 0:3) and corrupted (cols 3:6) features and
            # concatenate along lanes -> one (., 2H) slab shared by both passes
            return jnp.concatenate([fn(x6[:, 0:C]), fn(x6[:, C:2 * C])], axis=1)

        def sage(xj6, a01, inv_deg, wl, bl, wr, xdst6):
            # SAGEConv('mean'): mean_j(x_j) @ Wl + b_l + x_i @ Wr  (Wl pushed through the mean)
            msg = fused_pair(lambda xj: _fma_matmul(xj, wl), xj6)             # (E, 2H)
            out = agg_mean(a01, inv_deg, msg)                                 # (N_dst, 2H)
            out = out + fused_pair(lambda xd: _fma_matmul(xd, wr), xdst6)
            return out + jnp.concatenate([bl, bl], axis=1)

        def nnconv(xj6, wfe, a01, inv_deg, wroot, bias, xdst6):
            # NNConv('mean'): mean_{e:dst=i}(x_src(e) @ W_e) + x_i @ Wroot + bias
            def msg_of(xj):
                m = xj[:, 0:1] * wfe[0]
                for c in range(1, C):
                    m = m + xj[:, c:c + 1] * wfe[c]                           # VPU FMAs
                return m
            msg = fused_pair(msg_of, xj6)
            out = agg_mean(a01, inv_deg, msg)
            out = out + fused_pair(lambda xd: _fma_matmul(xd, wroot), xdst6)
            return out + jnp.concatenate([bias, bias], axis=1)

        out_gg = sage(edge[0:e_gg, 0:6], a_gg, d_gg, wl_gg, bl_gg, wr_gg, xg)
        out_cc = sage(edge[off_cc:off_cc + e_cc, 0:6], a_cc, d_cc, wl_cc, bl_cc, wr_cc, xc)
        out_cg = nnconv(edge[off_cg:off_cg + e_cg, 0:6], wf_cg, a_cg, d_cg,
                        wroot_cg, bias_cg, xg)
        out_gc = nnconv(edge[off_gc:off_gc + e_gc, 0:6], wf_gc, a_gc, d_gc,
                        wroot_gc, bias_gc, xc)

        # HeteroConv(aggr='mean'): two relations target each node type
        zg = 0.5 * (out_gg + out_cg)          # (n_gene, 2H): cols 0:H pos, H:2H neg
        zc = 0.5 * (out_cc + out_gc)          # (n_cell, 2H)
        pzg, nzg = zg[:, 0:H], zg[:, H:2 * H]
        pzc, nzc = zc[:, 0:H], zc[:, H:2 * H]

        # ---- readout + DGI loss, fused ----
        sg = jnp.dot(jnp.mean(pzg, axis=0, keepdims=True), wro_g,
                     preferred_element_type=f32) + bro_g
        sc = jnp.dot(jnp.mean(pzc, axis=0, keepdims=True), wro_c,
                     preferred_element_type=f32) + bro_c

        loss = jnp.float32(0.0)
        for pz, nz, s in ((pzg, nzg, sg), (pzc, nzc, sc)):
            pos_score = jnp.sum(pz * s, axis=1, keepdims=True)
            neg_score = jnp.sum(nz * s, axis=1, keepdims=True)
            loss = loss + (-jnp.mean(_logsigmoid(pos_score))
                           - jnp.mean(_logsigmoid(-neg_score)))
        loss_ref[0, 0] = loss

        # ---- single unmasked, lane-dense 128-wide store of pos_z (zero padded) ----
        def pad_rows(v):
            if v.shape[0] == n_pad:
                return v
            return jnp.concatenate(
                [v, jnp.zeros((n_pad - v.shape[0], v.shape[1]), f32)], axis=0)
        z_ref[...] = jnp.concatenate(
            [pad_rows(pzg), pad_rows(pzc),
             jnp.zeros((n_pad, _LANES - 2 * H), f32)], axis=1)

    return kernel


# ---------------------------------------------------------------------------
# Wrapper: one pallas_call for the whole forward
# ---------------------------------------------------------------------------
def _corruption(x_dict, rng):
    # torch.randperm analogue: independent row permutation per node type
    kg, kc = jax.random.split(rng)
    return {
        'gene': x_dict['gene'][jax.random.permutation(kg, x_dict['gene'].shape[0])],
        'cell': x_dict['cell'][jax.random.permutation(kc, x_dict['cell'].shape[0])],
    }


def _pack_params(params):
    slab = jnp.zeros((_P_ROWS, _P_COLS), jnp.float32)

    def put(s, r0, arr):
        return s.at[r0:r0 + arr.shape[0], 0:arr.shape[1]].set(arr)

    sgg, scc = params['sage_gg'], params['sage_cc']
    ncg, ngc = params['nnconv_cg'], params['nnconv_gc']
    en = params['edge_nn']
    rog, roc = params['readout']['gene'], params['readout']['cell']
    slab = put(slab, _P_WL_GG, sgg['w_l']); slab = put(slab, _P_BL_GG, sgg['b_l'])
    slab = put(slab, _P_WR_GG, sgg['w_r'])
    slab = put(slab, _P_WL_CC, scc['w_l']); slab = put(slab, _P_BL_CC, scc['b_l'])
    slab = put(slab, _P_WR_CC, scc['w_r'])
    slab = put(slab, _P_W1, en['w1']);      slab = put(slab, _P_B1, en['b1'])
    slab = put(slab, _P_WROOT_CG, ncg['w_root']); slab = put(slab, _P_BIAS_CG, ncg['bias'])
    slab = put(slab, _P_WROOT_GC, ngc['w_root']); slab = put(slab, _P_BIAS_GC, ngc['bias'])
    slab = put(slab, _P_WRO_G, rog['w']);   slab = put(slab, _P_BRO_G, rog['b'])
    slab = put(slab, _P_WRO_C, roc['w']);   slab = put(slab, _P_BRO_C, roc['b'])
    slab = put(slab, _P_W2, en['w2']);      slab = put(slab, _P_B2, en['b2'])
    return slab


def dgi_hetero_forward(params, x_dict, edge_index_dict, edge_attr_dict, rng):
    f32 = jnp.float32
    xg = x_dict['gene'].astype(f32)
    xc = x_dict['cell'].astype(f32)
    n_gene, n_cell = xg.shape[0], xc.shape[0]
    n_pad = _round_up(max(n_gene, n_cell), 8)

    x_pos = {'gene': xg, 'cell': xc}
    x_neg = _corruption(x_pos, rng)

    # Per-edge source gathers x_src[src] done here (O(E*C) XLA gather) so no (E, N_src)
    # one-hot gather matrices / matmuls exist inside the kernel.
    # TODO(synk): at large E, switch to an in-kernel scalar-prefetch / DMA row gather
    # plus an E-tiled 'arbitrary' grid axis so VMEM stays bounded (v7x: 64 MiB).
    blocks, dst_rows, e_pads = [], [], []
    for key in _RELATIONS:
        src_t, _, _ = key
        ei = edge_index_dict[key].astype(jnp.int32)
        src, dst = ei[0], ei[1]
        e = src.shape[0]
        e_pad = _round_up(e, 8)
        blk = jnp.zeros((e_pad, 7), f32)
        blk = blk.at[:e, 0:IN_CH].set(x_pos[src_t][src])
        blk = blk.at[:e, IN_CH:2 * IN_CH].set(x_neg[src_t][src])
        if key in edge_attr_dict:
            blk = blk.at[:e, 6:7].set(edge_attr_dict[key].astype(f32))
        blocks.append(blk)
        dst_rows.append((dst, e))
        e_pads.append(e_pad)

    edge_slab = jnp.concatenate(blocks, axis=0)                     # (sum e_pad, 7)
    e_max = max(e_pads)
    dst_idx = jnp.full((4, e_max), -1, jnp.int32)                   # -1 = padded edge
    for r, (dst, e) in enumerate(dst_rows):
        dst_idx = dst_idx.at[r, :e].set(dst)

    xg_f = jnp.concatenate([x_pos['gene'], x_neg['gene']], axis=1)  # (n_gene, 6)
    xc_f = jnp.concatenate([x_pos['cell'], x_neg['cell']], axis=1)  # (n_cell, 6)
    p_slab = _pack_params(params)

    kernel = _make_dgi_kernel(n_gene, n_cell, n_pad, tuple(e_pads))
    loss_arr, z = pl.pallas_call(
        kernel,
        out_shape=(jax.ShapeDtypeStruct((1, 1), f32),
                   jax.ShapeDtypeStruct((n_pad, _LANES), f32)),
        in_specs=[pl.BlockSpec(memory_space=pltpu.MemorySpace.VMEM)
                  for _ in range(5)],
        out_specs=(pl.BlockSpec(memory_space=pltpu.MemorySpace.SMEM),
                   pl.BlockSpec(memory_space=pltpu.MemorySpace.VMEM)),
        compiler_params=pltpu.CompilerParams(vmem_limit_bytes=32 * 1024 * 1024),
    )(xg_f, xc_f, edge_slab, dst_idx, p_slab)
    # TODO(synk): v7x — add a 2-way 'parallel' grid axis (gene-dst vs cell-dst relation
    # groups) with dimension_semantics=('parallel',) so the second TensorCore is used.

    pos_z = {'gene': z[:n_gene, :HIDDEN], 'cell': z[:n_cell, HIDDEN:2 * HIDDEN]}
    return loss_arr[0, 0], pos_z


# ---------------------------------------------------------------------------
# Pure-JAX reference (correctness self-check)
# ---------------------------------------------------------------------------
def _reference_forward(params, x_dict, edge_index_dict, edge_attr_dict, rng):
    def mean_aggr(dst, n_dst, msgs):
        onehot = jax.nn.one_hot(dst, n_dst, dtype=jnp.float32).T
        deg = onehot.sum(axis=1, keepdims=True)
        return (onehot / jnp.maximum(deg, 1.0)) @ msgs

    def sage(p, x_src, x_dst, ei):
        src, dst = ei[0], ei[1]
        agg = mean_aggr(dst, x_dst.shape[0], x_src[src])
        return agg @ p['w_l'] + p['b_l'] + x_dst @ p['w_r']

    def nnconv(p, en, x_src, x_dst, ei, ea):
        src, dst = ei[0], ei[1]
        hid = jax.nn.relu(ea @ en['w1'] + en['b1'])
        we = (hid @ en['w2'] + en['b2']).reshape(-1, IN_CH, HIDDEN)
        msg = jnp.einsum('ec,ech->eh', x_src[src], we)
        return mean_aggr(dst, x_dst.shape[0], msg) + x_dst @ p['w_root'] + p['bias']

    def encoder(xd):
        xg, xc = xd['gene'], xd['cell']
        gg = sage(params['sage_gg'], xg, xg, edge_index_dict[('gene', 'interacts', 'gene')])
        cc = sage(params['sage_cc'], xc, xc, edge_index_dict[('cell', 'interacts', 'cell')])
        cg = nnconv(params['nnconv_cg'], params['edge_nn'], xc, xg,
                    edge_index_dict[('cell', 'expresses', 'gene')],
                    edge_attr_dict[('cell', 'expresses', 'gene')])
        gc = nnconv(params['nnconv_gc'], params['edge_nn'], xg, xc,
                    edge_index_dict[('gene', 'expressed_in', 'cell')],
                    edge_attr_dict[('gene', 'expressed_in', 'cell')])
        return {'gene': 0.5 * (gg + cg), 'cell': 0.5 * (cc + gc)}

    pos_z = encoder(x_dict)
    neg_z = encoder(_corruption(x_dict, rng))
    loss = 0.0
    for t in ('gene', 'cell'):
        ro = params['readout'][t]
        s = pos_z[t].mean(axis=0, keepdims=True) @ ro['w'] + ro['b']
        loss += (-jax.nn.log_sigmoid((pos_z[t] * s).sum(axis=1)).mean()
                 - jax.nn.log_sigmoid(-(neg_z[t] * s).sum(axis=1)).mean())
    return loss, pos_z


# ---------------------------------------------------------------------------
# Deterministic parameter initialization (synthetic; no checkpoint load)
# ---------------------------------------------------------------------------
def init_params(key):
    def lin(k, fan_in, fan_out, bias=True):
        k1, k2 = jax.random.split(k)
        w = jax.random.normal(k1, (fan_in, fan_out), jnp.float32) * 0.1
        b = (jax.random.normal(k2, (1, fan_out), jnp.float32) * 0.01) if bias else None
        return w, b

    ks = jax.random.split(key, 12)
    params = {}
    for name, k_a, k_b in (('sage_gg', ks[0], ks[1]), ('sage_cc', ks[2], ks[3])):
        w_l, b_l = lin(k_a, IN_CH, HIDDEN)
        w_r, _ = lin(k_b, IN_CH, HIDDEN, bias=False)
        params[name] = {'w_l': w_l, 'b_l': b_l, 'w_r': w_r}
    w1, b1 = lin(ks[4], 1, EDGE_H)
    w2, b2 = lin(ks[5], EDGE_H, IN_CH * HIDDEN)
    params['edge_nn'] = {'w1': w1, 'b1': b1, 'w2': w2, 'b2': b2}
    for name, k_ in (('nnconv_cg', ks[6]), ('nnconv_gc', ks[7])):
        w_root, _ = lin(k_, IN_CH, HIDDEN, bias=False)
        params[name] = {'w_root': w_root, 'bias': jnp.zeros((1, HIDDEN), jnp.float32)}
    params['readout'] = {}
    for name, k_ in (('gene', ks[8]), ('cell', ks[9])):
        w, b = lin(k_, HIDDEN, HIDDEN)
        params['readout'][name] = {'w': w, 'b': b}
    return params


# ---------------------------------------------------------------------------
if __name__ == "__main__":
    key = jax.random.PRNGKey(0)
    kp, kxg, kxc, kei, kea, kperm = jax.random.split(key, 6)

    N_GENE, N_CELL = 12, 10
    E_GG, E_CC, E_CG, E_GC = 24, 20, 30, 30

    params = init_params(kp)
    x_dict = {
        'gene': jax.random.normal(kxg, (N_GENE, IN_CH), jnp.float32),
        'cell': jax.random.normal(kxc, (N_CELL, IN_CH), jnp.float32),
    }

    def rand_edges(k, n_src, n_dst, e):
        k_s, k_d = jax.random.split(k)
        return jnp.stack([jax.random.randint(k_s, (e,), 0, n_src, dtype=jnp.int32),
                          jax.random.randint(k_d, (e,), 0, n_dst, dtype=jnp.int32)])

    k1, k2, k3, k4 = jax.random.split(kei, 4)
    edge_index_dict = {
        ('gene', 'interacts', 'gene'): rand_edges(k1, N_GENE, N_GENE, E_GG),
        ('cell', 'interacts', 'cell'): rand_edges(k2, N_CELL, N_CELL, E_CC),
        ('cell', 'expresses', 'gene'): rand_edges(k3, N_CELL, N_GENE, E_CG),
        ('gene', 'expressed_in', 'cell'): rand_edges(k4, N_GENE, N_CELL, E_GC),
    }
    ka, kb = jax.random.split(kea)
    edge_attr_dict = {
        ('cell', 'expresses', 'gene'): jax.random.normal(ka, (E_CG, 1), jnp.float32),
        ('gene', 'expressed_in', 'cell'): jax.random.normal(kb, (E_GC, 1), jnp.float32),
    }

    forward = jax.jit(dgi_hetero_forward)
    loss, pos_z = forward(params, x_dict, edge_index_dict, edge_attr_dict, kperm)
    jax.block_until_ready((loss, pos_z))

    assert loss.shape == () and pos_z['gene'].shape == (N_GENE, HIDDEN) \
        and pos_z['cell'].shape == (N_CELL, HIDDEN)

    # correctness self-check against a pure-JAX f32 reference; tolerance relaxed to 5e-3
    # because the kernel uses bf16 MXU operands (f32 accumulate) for the aggregation
    # matmuls and an approximate EUP reciprocal for 1/deg, per the perf review.
    ref_loss, ref_pos = _reference_forward(params, x_dict, edge_index_dict,
                                           edge_attr_dict, kperm)
    assert jnp.allclose(loss, ref_loss, rtol=5e-3, atol=5e-3), (loss, ref_loss)
    assert jnp.allclose(pos_z['gene'], ref_pos['gene'], rtol=5e-3, atol=5e-3)
    assert jnp.allclose(pos_z['cell'], ref_pos['cell'], rtol=5e-3, atol=5e-3)

    print("KERNEL_OK")
</pallas_src>

<mosaic_0001>
module attributes {stable_mosaic.version = 11 : i64} {
  func.func @kernel(%arg0: memref<12x6xf32, #tpu.memory_space<vmem>>, %arg1: memref<10x6xf32, #tpu.memory_space<vmem>>, %arg2: memref<112x7xf32, #tpu.memory_space<vmem>>, %arg3: memref<4x32xi32, #tpu.memory_space<vmem>>, %arg4: memref<123x96xf32, #tpu.memory_space<vmem>>, %arg5: memref<1x1xf32, #tpu.memory_space<smem>>, %arg6: memref<16x128xf32, #tpu.memory_space<vmem>>) attributes {dimension_semantics = [], scalar_prefetch = 0 : i64, scratch_operands = 0 : i64, tpu.core_type = #tpu.core_type<tc>} {
    %c0 = arith.constant 0 : index
    %c0_0 = arith.constant 0 : index
    %0 = vector.load %arg4[%c0, %c0_0] : memref<123x96xf32, #tpu.memory_space<vmem>>, vector<3x32xf32>
    %c3 = arith.constant 3 : index
    %c0_1 = arith.constant 0 : index
    %1 = vector.load %arg4[%c3, %c0_1] : memref<123x96xf32, #tpu.memory_space<vmem>>, vector<1x32xf32>
    %c4 = arith.constant 4 : index
    %c0_2 = arith.constant 0 : index
    %2 = vector.load %arg4[%c4, %c0_2] : memref<123x96xf32, #tpu.memory_space<vmem>>, vector<3x32xf32>
    %c7 = arith.constant 7 : index
    %c0_3 = arith.constant 0 : index
    %3 = vector.load %arg4[%c7, %c0_3] : memref<123x96xf32, #tpu.memory_space<vmem>>, vector<3x32xf32>
    %c10 = arith.constant 10 : index
    %c0_4 = arith.constant 0 : index
    %4 = vector.load %arg4[%c10, %c0_4] : memref<123x96xf32, #tpu.memory_space<vmem>>, vector<1x32xf32>
    %c11 = arith.constant 11 : index
    %c0_5 = arith.constant 0 : index
    %5 = vector.load %arg4[%c11, %c0_5] : memref<123x96xf32, #tpu.memory_space<vmem>>, vector<3x32xf32>
    %c14 = arith.constant 14 : index
    %c0_6 = arith.constant 0 : index
    %6 = vector.load %arg4[%c14, %c0_6] : memref<123x96xf32, #tpu.memory_space<vmem>>, vector<1x32xf32>
    %c15 = arith.constant 15 : index
    %c0_7 = arith.constant 0 : index
    %7 = vector.load %arg4[%c15, %c0_7] : memref<123x96xf32, #tpu.memory_space<vmem>>, vector<1x32xf32>
    %c16 = arith.constant 16 : index
    %c0_8 = arith.constant 0 : index
    %8 = vector.load %arg4[%c16, %c0_8] : memref<123x96xf32, #tpu.memory_space<vmem>>, vector<3x32xf32>
    %c19 = arith.constant 19 : index
    %c0_9 = arith.constant 0 : index
    %9 = vector.load %arg4[%c19, %c0_9] : memref<123x96xf32, #tpu.memory_space<vmem>>, vector<1x32xf32>
    %c20 = arith.constant 20 : index
    %c0_10 = arith.constant 0 : index
    %10 = vector.load %arg4[%c20, %c0_10] : memref<123x96xf32, #tpu.memory_space<vmem>>, vector<3x32xf32>
    %c23 = arith.constant 23 : index
    %c0_11 = arith.constant 0 : index
    %11 = vector.load %arg4[%c23, %c0_11] : memref<123x96xf32, #tpu.memory_space<vmem>>, vector<1x32xf32>
    %c24 = arith.constant 24 : index
    %c0_12 = arith.constant 0 : index
    %12 = vector.load %arg4[%c24, %c0_12] : memref<123x96xf32, #tpu.memory_space<vmem>>, vector<32x32xf32>
    %c56 = arith.constant 56 : index
    %c0_13 = arith.constant 0 : index
    %13 = vector.load %arg4[%c56, %c0_13] : memref<123x96xf32, #tpu.memory_space<vmem>>, vector<1x32xf32>
    %c57 = arith.constant 57 : index
    %c0_14 = arith.constant 0 : index
    %14 = vector.load %arg4[%c57, %c0_14] : memref<123x96xf32, #tpu.memory_space<vmem>>, vector<32x32xf32>
    %c89 = arith.constant 89 : index
    %c0_15 = arith.constant 0 : index
    %15 = vector.load %arg4[%c89, %c0_15] : memref<123x96xf32, #tpu.memory_space<vmem>>, vector<1x32xf32>
    %c90 = arith.constant 90 : index
    %c0_16 = arith.constant 0 : index
    %16 = vector.load %arg4[%c90, %c0_16] : memref<123x96xf32, #tpu.memory_space<vmem>>, vector<32x96xf32>
    %c122 = arith.constant 122 : index
    %c0_17 = arith.constant 0 : index
    %17 = vector.load %arg4[%c122, %c0_17] : memref<123x96xf32, #tpu.memory_space<vmem>>, vector<1x96xf32>
    %c0_18 = arith.constant 0 : index
    %c0_19 = arith.constant 0 : index
    %18 = vector.load %arg0[%c0_18, %c0_19] : memref<12x6xf32, #tpu.memory_space<vmem>>, vector<12x6xf32>
    %c0_20 = arith.constant 0 : index
    %c0_21 = arith.constant 0 : index
    %19 = vector.load %arg1[%c0_20, %c0_21] : memref<10x6xf32, #tpu.memory_space<vmem>>, vector<10x6xf32>
    %c0_22 = arith.constant 0 : index
    %c0_23 = arith.constant 0 : index
    %20 = vector.load %arg2[%c0_22, %c0_23] : memref<112x7xf32, #tpu.memory_space<vmem>>, vector<112x7xf32>
    %c0_24 = arith.constant 0 : index
    %c0_25 = arith.constant 0 : index
    %21 = vector.load %arg3[%c0_24, %c0_25] : memref<4x32xi32, #tpu.memory_space<vmem>>, vector<1x24xi32>
    %22 = tpu.iota {dimensions = array<i32: 0>} : vector<12x24xi32>
    %23 = vector.broadcast %21 : vector<1x24xi32> to vector<12x24xi32>
    %24 = arith.cmpi eq, %22, %23 : vector<12x24xi32>
    %25 = arith.extui %24 : vector<12x24xi1> to vector<12x24xi32>
    %26 = arith.sitofp %25 : vector<12x24xi32> to vector<12x24xf32>
    %cst = arith.constant dense<0.000000e+00> : vector<12xf32>
    %27 = vector.multi_reduction <add>, %26, %cst [1] : vector<12x24xf32> to vector<12xf32>
    %28 = vector.shape_cast %27 : vector<12xf32> to vector<12x1xf32>
    %cst_26 = arith.constant 1.000000e+00 : f32
    %29 = vector.broadcast %cst_26 : f32 to vector<12x1xf32>
    %30 = arith.maximumf %28, %29 : vector<12x1xf32>
    %31 = tpu.reciprocal %30 {approx = true} : vector<12x1xf32> -> vector<12x1xf32>
    %32 = arith.truncf %26 : vector<12x24xf32> to vector<12x24xbf16>
    %c1 = arith.constant 1 : index
    %c0_27 = arith.constant 0 : index
    %33 = vector.load %arg3[%c1, %c0_27] : memref<4x32xi32, #tpu.memory_space<vmem>>, vector<1x24xi32>
    %34 = tpu.iota {dimensions = array<i32: 0>} : vector<10x24xi32>
    %35 = vector.broadcast %33 : vector<1x24xi32> to vector<10x24xi32>
    %36 = arith.cmpi eq, %34, %35 : vector<10x24xi32>
    %37 = arith.extui %36 : vector<10x24xi1> to vector<10x24xi32>
    %38 = arith.sitofp %37 : vector<10x24xi32> to vector<10x24xf32>
    %cst_28 = arith.constant dense<0.000000e+00> : vector<10xf32>
    %39 = vector.multi_reduction <add>, %38, %cst_28 [1] : vector<10x24xf32> to vector<10xf32>
    %40 = vector.shape_cast %39 : vector<10xf32> to vector<10x1xf32>
    %cst_29 = arith.constant 1.000000e+00 : f32
    %41 = vector.broadcast %cst_29 : f32 to vector<10x1xf32>
    %42 = arith.maximumf %40, %41 : vector<10x1xf32>
    %43 = tpu.reciprocal %42 {approx = true} : vector<10x1xf32> -> vector<10x1xf32>
    %44 = arith.truncf %38 : vector<10x24xf32> to vector<10x24xbf16>
    %c2 = arith.constant 2 : index
    %c0_30 = arith.constant 0 : index
    %45 = vector.load %arg3[%c2, %c0_30] : memref<4x32xi32, #tpu.memory_space<vmem>>, vector<1x32xi32>
    %46 = tpu.iota {dimensions = array<i32: 0>} : vector<12x32xi32>
    %47 = vector.broadcast %45 : vector<1x32xi32> to vector<12x32xi32>
    %48 = arith.cmpi eq, %46, %47 : vector<12x32xi32>
    %49 = arith.extui %48 : vector<12x32xi1> to vector<12x32xi32>
    %50 = arith.sitofp %49 : vector<12x32xi32> to vector<12x32xf32>
    %cst_31 = arith.constant dense<0.000000e+00> : vector<12xf32>
    %51 = vector.multi_reduction <add>, %50, %cst_31 [1] : vector<12x32xf32> to vector<12xf32>
    %52 = vector.shape_cast %51 : vector<12xf32> to vector<12x1xf32>
    %cst_32 = arith.constant 1.000000e+00 : f32
    %53 = vector.broadcast %cst_32 : f32 to vector<12x1xf32>
    %54 = arith.maximumf %52, %53 : vector<12x1xf32>
    %55 = tpu.reciprocal %54 {approx = true} : vector<12x1xf32> -> vector<12x1xf32>
    %56 = arith.truncf %50 : vector<12x32xf32> to vector<12x32xbf16>
    %c3_33 = arith.constant 3 : index
    %c0_34 = arith.constant 0 : index
    %57 = vector.load %arg3[%c3_33, %c0_34] : memref<4x32xi32, #tpu.memory_space<vmem>>, vector<1x32xi32>
    %58 = tpu.iota {dimensions = array<i32: 0>} : vector<10x32xi32>
    %59 = vector.broadcast %57 : vector<1x32xi32> to vector<10x32xi32>
    %60 = arith.cmpi eq, %58, %59 : vector<10x32xi32>
    %61 = arith.extui %60 : vector<10x32xi1> to vector<10x32xi32>
    %62 = arith.sitofp %61 : vector<10x32xi32> to vector<10x32xf32>
    %cst_35 = arith.constant dense<0.000000e+00> : vector<10xf32>
    %63 = vector.multi_reduction <add>, %62, %cst_35 [1] : vector<10x32xf32> to vector<10xf32>
    %64 = vector.shape_cast %63 : vector<10xf32> to vector<10x1xf32>
    %cst_36 = arith.constant 1.000000e+00 : f32
    %65 = vector.broadcast %cst_36 : f32 to vector<10x1xf32>
    %66 = arith.maximumf %64, %65 : vector<10x1xf32>
    %67 = tpu.reciprocal %66 {approx = true} : vector<10x1xf32> -> vector<10x1xf32>
    %68 = arith.truncf %62 : vector<10x32xf32> to vector<10x32xbf16>
    %69 = vector.extract_strided_slice %20 {offsets = [48, 6], sizes = [64, 1], strides = [1, 1]} : vector<112x7xf32> to vector<64x1xf32>
    %70 = vector.broadcast %69 : vector<64x1xf32> to vector<64x32xf32>
    %71 = vector.broadcast %6 : vector<1x32xf32> to vector<64x32xf32>
    %72 = arith.mulf %70, %71 : vector<64x32xf32>
    %73 = vector.broadcast %7 : vector<1x32xf32> to vector<64x32xf32>
    %74 = arith.addf %72, %73 : vector<64x32xf32>
    %cst_37 = arith.constant 0.000000e+00 : f32
    %75 = vector.broadcast %cst_37 : f32 to vector<64x32xf32>
    %76 = arith.maximumf %74, %75 : vector<64x32xf32>
    %cst_38 = arith.constant dense<0.000000e+00> : vector<64x96xf32>
    %77 = tpu.matmul %76, %16, %cst_38 {dimension_numbers = #tpu.dot_dimension_numbers<[1], [0], [0], [1], [0, 0, 1, 1], [], []>} : vector<64x32xf32>, vector<32x96xf32>, vector<64x96xf32> -> vector<64x96xf32>
    %78 = vector.broadcast %17 : vector<1x96xf32> to vector<64x96xf32>
    %79 = arith.addf %77, %78 : vector<64x96xf32>
    %80 = vector.extract_strided_slice %79 {offsets = [0, 0], sizes = [64, 32], strides = [1, 1]} : vector<64x96xf32> to vector<64x32xf32>
    %81 = vector.extract_strided_slice %79 {offsets = [0, 32], sizes = [64, 32], strides = [1, 1]} : vector<64x96xf32> to vector<64x32xf32>
    %82 = vector.extract_strided_slice %79 {offsets = [0, 64], sizes = [64, 32], strides = [1, 1]} : vector<64x96xf32> to vector<64x32xf32>
    %83 = vector.extract_strided_slice %80 {offsets = [0, 0], sizes = [32, 32], strides = [1, 1]} : vector<64x32xf32> to vector<32x32xf32>
    %84 = vector.extract_strided_slice %81 {offsets = [0, 0], sizes = [32, 32], strides = [1, 1]} : vector<64x32xf32> to vector<32x32xf32>
    %85 = vector.extract_strided_slice %82 {offsets = [0, 0], sizes = [32, 32], strides = [1, 1]} : vector<64x32xf32> to vector<32x32xf32>
    %86 = vector.extract_strided_slice %80 {offsets = [32, 0], sizes = [32, 32], strides = [1, 1]} : vector<64x32xf32> to vector<32x32xf32>
    %87 = vector.extract_strided_slice %81 {offsets = [32, 0], sizes = [32, 32], strides = [1, 1]} : vector<64x32xf32> to vector<32x32xf32>
    %88 = vector.extract_strided_slice %82 {offsets = [32, 0], sizes = [32, 32], strides = [1, 1]} : vector<64x32xf32> to vector<32x32xf32>
    %89 = vector.extract_strided_slice %20 {offsets = [0, 0], sizes = [24, 6], strides = [1, 1]} : vector<112x7xf32> to vector<24x6xf32>
    %90 = vector.extract_strided_slice %89 {offsets = [0, 0], sizes = [24, 3], strides = [1, 1]} : vector<24x6xf32> to vector<24x3xf32>
    %91 = vector.extract_strided_slice %90 {offsets = [0, 0], sizes = [24, 1], strides = [1, 1]} : vector<24x3xf32> to vector<24x1xf32>
    %92 = vector.extract_strided_slice %0 {offsets = [0, 0], sizes = [1, 32], strides = [1, 1]} : vector<3x32xf32> to vector<1x32xf32>
    %93 = vector.broadcast %91 : vector<24x1xf32> to vector<24x32xf32>
    %94 = vector.broadcast %92 : vector<1x32xf32> to vector<24x32xf32>
    %95 = arith.mulf %93, %94 : vector<24x32xf32>
    %96 = vector.extract_strided_slice %90 {offsets = [0, 1], sizes = [24, 1], strides = [1, 1]} : vector<24x3xf32> to vector<24x1xf32>
    %97 = vector.extract_strided_slice %0 {offsets = [1, 0], sizes = [1, 32], strides = [1, 1]} : vector<3x32xf32> to vector<1x32xf32>
    %98 = vector.broadcast %96 : vector<24x1xf32> to vector<24x32xf32>
    %99 = vector.broadcast %97 : vector<1x32xf32> to vector<24x32xf32>
    %100 = arith.mulf %98, %99 : vector<24x32xf32>
    %101 = arith.addf %95, %100 : vector<24x32xf32>
    %102 = vector.extract_strided_slice %90 {offsets = [0, 2], sizes = [24, 1], strides = [1, 1]} : vector<24x3xf32> to vector<24x1xf32>
    %103 = vector.extract_strided_slice %0 {offsets = [2, 0], sizes = [1, 32], strides = [1, 1]} : vector<3x32xf32> to vector<1x32xf32>
    %104 = vector.broadcast %102 : vector<24x1xf32> to vector<24x32xf32>
    %105 = vector.broadcast %103 : vector<1x32xf32> to vector<24x32xf32>
    %106 = arith.mulf %104, %105 : vector<24x32xf32>
    %107 = arith.addf %101, %106 : vector<24x32xf32>
    %108 = vector.extract_strided_slice %89 {offsets = [0, 3], sizes = [24, 3], strides = [1, 1]} : vector<24x6xf32> to vector<24x3xf32>
    %109 = vector.extract_strided_slice %108 {offsets = [0, 0], sizes = [24, 1], strides = [1, 1]} : vector<24x3xf32> to vector<24x1xf32>
    %110 = vector.extract_strided_slice %0 {offsets = [0, 0], sizes = [1, 32], strides = [1, 1]} : vector<3x32xf32> to vector<1x32xf32>
    %111 = vector.broadcast %109 : vector<24x1xf32> to vector<24x32xf32>
    %112 = vector.broadcast %110 : vector<1x32xf32> to vector<24x32xf32>
    %113 = arith.mulf %111, %112 : vector<24x32xf32>
    %114 = vector.extract_strided_slice %108 {offsets = [0, 1], sizes = [24, 1], strides = [1, 1]} : vector<24x3xf32> to vector<24x1xf32>
    %115 = vector.extract_strided_slice %0 {offsets = [1, 0], sizes = [1, 32], strides = [1, 1]} : vector<3x32xf32> to vector<1x32xf32>
    %116 = vector.broadcast %114 : vector<24x1xf32> to vector<24x32xf32>
    %117 = vector.broadcast %115 : vector<1x32xf32> to vector<24x32xf32>
    %118 = arith.mulf %116, %117 : vector<24x32xf32>
    %119 = arith.addf %113, %118 : vector<24x32xf32>
    %120 = vector.extract_strided_slice %108 {offsets = [0, 2], sizes = [24, 1], strides = [1, 1]} : vector<24x3xf32> to vector<24x1xf32>
    %121 = vector.extract_strided_slice %0 {offsets = [2, 0], sizes = [1, 32], strides = [1, 1]} : vector<3x32xf32> to vector<1x32xf32>
    %122 = vector.broadcast %120 : vector<24x1xf32> to vector<24x32xf32>
    %123 = vector.broadcast %121 : vector<1x32xf32> to vector<24x32xf32>
    %124 = arith.mulf %122, %123 : vector<24x32xf32>
    %125 = arith.addf %119, %124 : vector<24x32xf32>
    %126 = tpu.concatenate %107, %125 in 1 : vector<24x32xf32>, vector<24x32xf32> -> vector<24x64xf32>
    %127 = arith.truncf %126 : vector<24x64xf32> to vector<24x64xbf16>
    %cst_39 = arith.constant dense<0.000000e+00> : vector<12x64xf32>
    %128 = tpu.matmul %32, %127, %cst_39 {dimension_numbers = #tpu.dot_dimension_numbers<[1], [0], [0], [1], [0, 0, 1, 1], [], []>} : vector<12x24xbf16>, vector<24x64xbf16>, vector<12x64xf32> -> vector<12x64xf32>
    %129 = vector.broadcast %31 : vector<12x1xf32> to vector<12x64xf32>
    %130 = arith.mulf %128, %129 : vector<12x64xf32>
    %131 = vector.extract_strided_slice %18 {offsets = [0, 0], sizes = [12, 3], strides = [1, 1]} : vector<12x6xf32> to vector<12x3xf32>
    %132 = vector.extract_strided_slice %131 {offsets = [0, 0], sizes = [12, 1], strides = [1, 1]} : vector<12x3xf32> to vector<12x1xf32>
    %133 = vector.extract_strided_slice %2 {offsets = [0, 0], sizes = [1, 32], strides = [1, 1]} : vector<3x32xf32> to vector<1x32xf32>
    %134 = vector.broadcast %132 : vector<12x1xf32> to vector<12x32xf32>
    %135 = vector.broadcast %133 : vector<1x32xf32> to vector<12x32xf32>
    %136 = arith.mulf %134, %135 : vector<12x32xf32>
    %137 = vector.extract_strided_slice %131 {offsets = [0, 1], sizes = [12, 1], strides = [1, 1]} : vector<12x3xf32> to vector<12x1xf32>
    %138 = vector.extract_strided_slice %2 {offsets = [1, 0], sizes = [1, 32], strides = [1, 1]} : vector<3x32xf32> to vector<1x32xf32>
    %139 = vector.broadcast %137 : vector<12x1xf32> to vector<12x32xf32>
    %140 = vector.broadcast %138 : vector<1x32xf32> to vector<12x32xf32>
    %141 = arith.mulf %139, %140 : vector<12x32xf32>
    %142 = arith.addf %136, %141 : vector<12x32xf32>
    %143 = vector.extract_strided_slice %131 {offsets = [0, 2], sizes = [12, 1], strides = [1, 1]} : vector<12x3xf32> to vector<12x1xf32>
    %144 = vector.extract_strided_slice %2 {offsets = [2, 0], sizes = [1, 32], strides = [1, 1]} : vector<3x32xf32> to vector<1x32xf32>
    %145 = vector.broadcast %143 : vector<12x1xf32> to vector<12x32xf32>
    %146 = vector.broadcast %144 : vector<1x32xf32> to vector<12x32xf32>
    %147 = arith.mulf %145, %146 : vector<12x32xf32>
    %148 = arith.addf %142, %147 : vector<12x32xf32>
    %149 = vector.extract_strided_slice %18 {offsets = [0, 3], sizes = [12, 3], strides = [1, 1]} : vector<12x6xf32> to vector<12x3xf32>
    %150 = vector.extract_strided_slice %149 {offsets = [0, 0], sizes = [12, 1], strides = [1, 1]} : vector<12x3xf32> to vector<12x1xf32>
    %151 = vector.extract_strided_slice %2 {offsets = [0, 0], sizes = [1, 32], strides = [1, 1]} : vector<3x32xf32> to vector<1x32xf32>
    %152 = vector.broadcast %150 : vector<12x1xf32> to vector<12x32xf32>
    %153 = vector.broadcast %151 : vector<1x32xf32> to vector<12x32xf32>
    %154 = arith.mulf %152, %153 : vector<12x32xf32>
    %155 = vector.extract_strided_slice %149 {offsets = [0, 1], sizes = [12, 1], strides = [1, 1]} : vector<12x3xf32> to vector<12x1xf32>
    %156 = vector.extract_strided_slice %2 {offsets = [1, 0], sizes = [1, 32], strides = [1, 1]} : vector<3x32xf32> to vector<1x32xf32>
    %157 = vector.broadcast %155 : vector<12x1xf32> to vector<12x32xf32>
    %158 = vector.broadcast %156 : vector<1x32xf32> to vector<12x32xf32>
    %159 = arith.mulf %157, %158 : vector<12x32xf32>
    %160 = arith.addf %154, %159 : vector<12x32xf32>
    %161 = vector.extract_strided_slice %149 {offsets = [0, 2], sizes = [12, 1], strides = [1, 1]} : vector<12x3xf32> to vector<12x1xf32>
    %162 = vector.extract_strided_slice %2 {offsets = [2, 0], sizes = [1, 32], strides = [1, 1]} : vector<3x32xf32> to vector<1x32xf32>
    %163 = vector.broadcast %161 : vector<12x1xf32> to vector<12x32xf32>
    %164 = vector.broadcast %162 : vector<1x32xf32> to vector<12x32xf32>
    %165 = arith.mulf %163, %164 : vector<12x32xf32>
    %166 = arith.addf %160, %165 : vector<12x32xf32>
    %167 = tpu.concatenate %148, %166 in 1 : vector<12x32xf32>, vector<12x32xf32> -> vector<12x64xf32>
    %168 = arith.addf %130, %167 : vector<12x64xf32>
    %169 = tpu.concatenate %1, %1 in 1 : vector<1x32xf32>, vector<1x32xf32> -> vector<1x64xf32>
    %170 = vector.broadcast %169 : vector<1x64xf32> to vector<12x64xf32>
    %171 = arith.addf %168, %170 : vector<12x64xf32>
    %172 = vector.extract_strided_slice %20 {offsets = [24, 0], sizes = [24, 6], strides = [1, 1]} : vector<112x7xf32> to vector<24x6xf32>
    %173 = vector.extract_strided_slice %172 {offsets = [0, 0], sizes = [24, 3], strides = [1, 1]} : vector<24x6xf32> to vector<24x3xf32>
    %174 = vector.extract_strided_slice %173 {offsets = [0, 0], sizes = [24, 1], strides = [1, 1]} : vector<24x3xf32> to vector<24x1xf32>
    %175 = vector.extract_strided_slice %3 {offsets = [0, 0], sizes = [1, 32], strides = [1, 1]} : vector<3x32xf32> to vector<1x32xf32>
    %176 = vector.broadcast %174 : vector<24x1xf32> to vector<24x32xf32>
    %177 = vector.broadcast %175 : vector<1x32xf32> to vector<24x32xf32>
    %178 = arith.mulf %176, %177 : vector<24x32xf32>
    %179 = vector.extract_strided_slice %173 {offsets = [0, 1], sizes = [24, 1], strides = [1, 1]} : vector<24x3xf32> to vector<24x1xf32>
    %180 = vector.extract_strided_slice %3 {offsets = [1, 0], sizes = [1, 32], strides = [1, 1]} : vector<3x32xf32> to vector<1x32xf32>
    %181 = vector.broadcast %179 : vector<24x1xf32> to vector<24x32xf32>
    %182 = vector.broadcast %180 : vector<1x32xf32> to vector<24x32xf32>
    %183 = arith.mulf %181, %182 : vector<24x32xf32>
    %184 = arith.addf %178, %183 : vector<24x32xf32>
    %185 = vector.extract_strided_slice %173 {offsets = [0, 2], sizes = [24, 1], strides = [1, 1]} : vector<24x3xf32> to vector<24x1xf32>
    %186 = vector.extract_strided_slice %3 {offsets = [2, 0], sizes = [1, 32], strides = [1, 1]} : vector<3x32xf32> to vector<1x32xf32>
    %187 = vector.broadcast %185 : vector<24x1xf32> to vector<24x32xf32>
    %188 = vector.broadcast %186 : vector<1x32xf32> to vector<24x32xf32>
    %189 = arith.mulf %187, %188 : vector<24x32xf32>
    %190 = arith.addf %184, %189 : vector<24x32xf32>
    %191 = vector.extract_strided_slice %172 {offsets = [0, 3], sizes = [24, 3], strides = [1, 1]} : vector<24x6xf32> to vector<24x3xf32>
    %192 = vector.extract_strided_slice %191 {offsets = [0, 0], sizes = [24, 1], strides = [1, 1]} : vector<24x3xf32> to vector<24x1xf32>
    %193 = vector.extract_strided_slice %3 {offsets = [0, 0], sizes = [1, 32], strides = [1, 1]} : vector<3x32xf32> to vector<1x32xf32>
    %194 = vector.broadcast %192 : vector<24x1xf32> to vector<24x32xf32>
    %195 = vector.broadcast %193 : vector<1x32xf32> to vector<24x32xf32>
    %196 = arith.mulf %194, %195 : vector<24x32xf32>
    %197 = vector.extract_strided_slice %191 {offsets = [0, 1], sizes = [24, 1], strides = [1, 1]} : vector<24x3xf32> to vector<24x1xf32>
    %198 = vector.extract_strided_slice %3 {offsets = [1, 0], sizes = [1, 32], strides = [1, 1]} : vector<3x32xf32> to vector<1x32xf32>
    %199 = vector.broadcast %197 : vector<24x1xf32> to vector<24x32xf32>
    %200 = vector.broadcast %198 : vector<1x32xf32> to vector<24x32xf32>
    %201 = arith.mulf %199, %200 : vector<24x32xf32>
    %202 = arith.addf %196, %201 : vector<24x32xf32>
    %203 = vector.extract_strided_slice %191 {offsets = [0, 2], sizes = [24, 1], strides = [1, 1]} : vector<24x3xf32> to vector<24x1xf32>
    %204 = vector.extract_strided_slice %3 {offsets = [2, 0], sizes = [1, 32], strides = [1, 1]} : vector<3x32xf32> to vector<1x32xf32>
    %205 = vector.broadcast %203 : vector<24x1xf32> to vector<24x32xf32>
    %206 = vector.broadcast %204 : vector<1x32xf32> to vector<24x32xf32>
    %207 = arith.mulf %205, %206 : vector<24x32xf32>
    %208 = arith.addf %202, %207 : vector<24x32xf32>
    %209 = tpu.concatenate %190, %208 in 1 : vector<24x32xf32>, vector<24x32xf32> -> vector<24x64xf32>
    %210 = arith.truncf %209 : vector<24x64xf32> to vector<24x64xbf16>
    %cst_40 = arith.constant dense<0.000000e+00> : vector<10x64xf32>
    %211 = tpu.matmul %44, %210, %cst_40 {dimension_numbers = #tpu.dot_dimension_numbers<[1], [0], [0], [1], [0, 0, 1, 1], [], []>} : vector<10x24xbf16>, vector<24x64xbf16>, vector<10x64xf32> -> vector<10x64xf32>
    %212 = vector.broadcast %43 : vector<10x1xf32> to vector<10x64xf32>
    %213 = arith.mulf %211, %212 : vector<10x64xf32>
    %214 = vector.extract_strided_slice %19 {offsets = [0, 0], sizes = [10, 3], strides = [1, 1]} : vector<10x6xf32> to vector<10x3xf32>
    %215 = vector.extract_strided_slice %214 {offsets = [0, 0], sizes = [10, 1], strides = [1, 1]} : vector<10x3xf32> to vector<10x1xf32>
    %216 = vector.extract_strided_slice %5 {offsets = [0, 0], sizes = [1, 32], strides = [1, 1]} : vector<3x32xf32> to vector<1x32xf32>
    %217 = vector.broadcast %215 : vector<10x1xf32> to vector<10x32xf32>
    %218 = vector.broadcast %216 : vector<1x32xf32> to vector<10x32xf32>
    %219 = arith.mulf %217, %218 : vector<10x32xf32>
    %220 = vector.extract_strided_slice %214 {offsets = [0, 1], sizes = [10, 1], strides = [1, 1]} : vector<10x3xf32> to vector<10x1xf32>
    %221 = vector.extract_strided_slice %5 {offsets = [1, 0], sizes = [1, 32], strides = [1, 1]} : vector<3x32xf32> to vector<1x32xf32>
    %222 = vector.broadcast %220 : vector<10x1xf32> to vector<10x32xf32>
    %223 = vector.broadcast %221 : vector<1x32xf32> to vector<10x32xf32>
    %224 = arith.mulf %222, %223 : vector<10x32xf32>
    %225 = arith.addf %219, %224 : vector<10x32xf32>
    %226 = vector.extract_strided_slice %214 {offsets = [0, 2], sizes = [10, 1], strides = [1, 1]} : vector<10x3xf32> to vector<10x1xf32>
    %227 = vector.extract_strided_slice %5 {offsets = [2, 0], sizes = [1, 32], strides = [1, 1]} : vector<3x32xf32> to vector<1x32xf32>
    %228 = vector.broadcast %226 : vector<10x1xf32> to vector<10x32xf32>
    %229 = vector.broadcast %227 : vector<1x32xf32> to vector<10x32xf32>
    %230 = arith.mulf %228, %229 : vector<10x32xf32>
    %231 = arith.addf %225, %230 : vector<10x32xf32>
    %232 = vector.extract_strided_slice %19 {offsets = [0, 3], sizes = [10, 3], strides = [1, 1]} : vector<10x6xf32> to vector<10x3xf32>
    %233 = vector.extract_strided_slice %232 {offsets = [0, 0], sizes = [10, 1], strides = [1, 1]} : vector<10x3xf32> to vector<10x1xf32>
    %234 = vector.extract_strided_slice %5 {offsets = [0, 0], sizes = [1, 32], strides = [1, 1]} : vector<3x32xf32> to vector<1x32xf32>
    %235 = vector.broadcast %233 : vector<10x1xf32> to vector<10x32xf32>
    %236 = vector.broadcast %234 : vector<1x32xf32> to vector<10x32xf32>
    %237 = arith.mulf %235, %236 : vector<10x32xf32>
    %238 = vector.extract_strided_slice %232 {offsets = [0, 1], sizes = [10, 1], strides = [1, 1]} : vector<10x3xf32> to vector<10x1xf32>
    %239 = vector.extract_strided_slice %5 {offsets = [1, 0], sizes = [1, 32], strides = [1, 1]} : vector<3x32xf32> to vector<1x32xf32>
    %240 = vector.broadcast %238 : vector<10x1xf32> to vector<10x32xf32>
    %241 = vector.broadcast %239 : vector<1x32xf32> to vector<10x32xf32>
    %242 = arith.mulf %240, %241 : vector<10x32xf32>
    %243 = arith.addf %237, %242 : vector<10x32xf32>
    %244 = vector.extract_strided_slice %232 {offsets = [0, 2], sizes = [10, 1], strides = [1, 1]} : vector<10x3xf32> to vector<10x1xf32>
    %245 = vector.extract_strided_slice %5 {offsets = [2, 0], sizes = [1, 32], strides = [1, 1]} : vector<3x32xf32> to vector<1x32xf32>
    %246 = vector.broadcast %244 : vector<10x1xf32> to vector<10x32xf32>
    %247 = vector.broadcast %245 : vector<1x32xf32> to vector<10x32xf32>
    %248 = arith.mulf %246, %247 : vector<10x32xf32>
    %249 = arith.addf %243, %248 : vector<10x32xf32>
    %250 = tpu.concatenate %231, %249 in 1 : vector<10x32xf32>, vector<10x32xf32> -> vector<10x64xf32>
    %251 = arith.addf %213, %250 : vector<10x64xf32>
    %252 = tpu.concatenate %4, %4 in 1 : vector<1x32xf32>, vector<1x32xf32> -> vector<1x64xf32>
    %253 = vector.broadcast %252 : vector<1x64xf32> to vector<10x64xf32>
    %254 = arith.addf %251, %253 : vector<10x64xf32>
    %255 = vector.extract_strided_slice %20 {offsets = [48, 0], sizes = [32, 6], strides = [1, 1]} : vector<112x7xf32> to vector<32x6xf32>
    %256 = vector.extract_strided_slice %255 {offsets = [0, 0], sizes = [32, 3], strides = [1, 1]} : vector<32x6xf32> to vector<32x3xf32>
    %257 = vector.extract_strided_slice %256 {offsets = [0, 0], sizes = [32, 1], strides = [1, 1]} : vector<32x3xf32> to vector<32x1xf32>
    %258 = vector.broadcast %257 : vector<32x1xf32> to vector<32x32xf32>
    %259 = arith.mulf %258, %83 : vector<32x32xf32>
    %260 = vector.extract_strided_slice %256 {offsets = [0, 1], sizes = [32, 1], strides = [1, 1]} : vector<32x3xf32> to vector<32x1xf32>
    %261 = vector.broadcast %260 : vector<32x1xf32> to vector<32x32xf32>
    %262 = arith.mulf %261, %84 : vector<32x32xf32>
    %263 = arith.addf %259, %262 : vector<32x32xf32>
    %264 = vector.extract_strided_slice %256 {offsets = [0, 2], sizes = [32, 1], strides = [1, 1]} : vector<32x3xf32> to vector<32x1xf32>
    %265 = vector.broadcast %264 : vector<32x1xf32> to vector<32x32xf32>
    %266 = arith.mulf %265, %85 : vector<32x32xf32>
    %267 = arith.addf %263, %266 : vector<32x32xf32>
    %268 = vector.extract_strided_slice %255 {offsets = [0, 3], sizes = [32, 3], strides = [1, 1]} : vector<32x6xf32> to vector<32x3xf32>
    %269 = vector.extract_strided_slice %268 {offsets = [0, 0], sizes = [32, 1], strides = [1, 1]} : vector<32x3xf32> to vector<32x1xf32>
    %270 = vector.broadcast %269 : vector<32x1xf32> to vector<32x32xf32>
    %271 = arith.mulf %270, %83 : vector<32x32xf32>
    %272 = vector.extract_strided_slice %268 {offsets = [0, 1], sizes = [32, 1], strides = [1, 1]} : vector<32x3xf32> to vector<32x1xf32>
    %273 = vector.broadcast %272 : vector<32x1xf32> to vector<32x32xf32>
    %274 = arith.mulf %273, %84 : vector<32x32xf32>
    %275 = arith.addf %271, %274 : vector<32x32xf32>
    %276 = vector.extract_strided_slice %268 {offsets = [0, 2], sizes = [32, 1], strides = [1, 1]} : vector<32x3xf32> to vector<32x1xf32>
    %277 = vector.broadcast %276 : vector<32x1xf32> to vector<32x32xf32>
    %278 = arith.mulf %277, %85 : vector<32x32xf32>
    %279 = arith.addf %275, %278 : vector<32x32xf32>
    %280 = tpu.concatenate %267, %279 in 1 : vector<32x32xf32>, vector<32x32xf32> -> vector<32x64xf32>
    %281 = arith.truncf %280 : vector<32x64xf32> to vector<32x64xbf16>
    %cst_41 = arith.constant dense<0.000000e+00> : vector<12x64xf32>
    %282 = tpu.matmul %56, %281, %cst_41 {dimension_numbers = #tpu.dot_dimension_numbers<[1], [0], [0], [1], [0, 0, 1, 1], [], []>} : vector<12x32xbf16>, vector<32x64xbf16>, vector<12x64xf32> -> vector<12x64xf32>
    %283 = vector.broadcast %55 : vector<12x1xf32> to vector<12x64xf32>
    %284 = arith.mulf %282, %283 : vector<12x64xf32>
    %285 = vector.extract_strided_slice %18 {offsets = [0, 0], sizes = [12, 3], strides = [1, 1]} : vector<12x6xf32> to vector<12x3xf32>
    %286 = vector.extract_strided_slice %285 {offsets = [0, 0], sizes = [12, 1], strides = [1, 1]} : vector<12x3xf32> to vector<12x1xf32>
    %287 = vector.extract_strided_slice %8 {offsets = [0, 0], sizes = [1, 32], strides = [1, 1]} : vector<3x32xf32> to vector<1x32xf32>
    %288 = vector.broadcast %286 : vector<12x1xf32> to vector<12x32xf32>
    %289 = vector.broadcast %287 : vector<1x32xf32> to vector<12x32xf32>
    %290 = arith.mulf %288, %289 : vector<12x32xf32>
    %291 = vector.extract_strided_slice %285 {offsets = [0, 1], sizes = [12, 1], strides = [1, 1]} : vector<12x3xf32> to vector<12x1xf32>
    %292 = vector.extract_strided_slice %8 {offsets = [1, 0], sizes = [1, 32], strides = [1, 1]} : vector<3x32xf32> to vector<1x32xf32>
    %293 = vector.broadcast %291 : vector<12x1xf32> to vector<12x32xf32>
    %294 = vector.broadcast %292 : vector<1x32xf32> to vector<12x32xf32>
    %295 = arith.mulf %293, %294 : vector<12x32xf32>
    %296 = arith.addf %290, %295 : vector<12x32xf32>
    %297 = vector.extract_strided_slice %285 {offsets = [0, 2], sizes = [12, 1], strides = [1, 1]} : vector<12x3xf32> to vector<12x1xf32>
    %298 = vector.extract_strided_slice %8 {offsets = [2, 0], sizes = [1, 32], strides = [1, 1]} : vector<3x32xf32> to vector<1x32xf32>
    %299 = vector.broadcast %297 : vector<12x1xf32> to vector<12x32xf32>
    %300 = vector.broadcast %298 : vector<1x32xf32> to vector<12x32xf32>
    %301 = arith.mulf %299, %300 : vector<12x32xf32>
    %302 = arith.addf %296, %301 : vector<12x32xf32>
    %303 = vector.extract_strided_slice %18 {offsets = [0, 3], sizes = [12, 3], strides = [1, 1]} : vector<12x6xf32> to vector<12x3xf32>
    %304 = vector.extract_strided_slice %303 {offsets = [0, 0], sizes = [12, 1], strides = [1, 1]} : vector<12x3xf32> to vector<12x1xf32>
    %305 = vector.extract_strided_slice %8 {offsets = [0, 0], sizes = [1, 32], strides = [1, 1]} : vector<3x32xf32> to vector<1x32xf32>
    %306 = vector.broadcast %304 : vector<12x1xf32> to vector<12x32xf32>
    %307 = vector.broadcast %305 : vector<1x32xf32> to vector<12x32xf32>
    %308 = arith.mulf %306, %307 : vector<12x32xf32>
    %309 = vector.extract_strided_slice %303 {offsets = [0, 1], sizes = [12, 1], strides = [1, 1]} : vector<12x3xf32> to vector<12x1xf32>
    %310 = vector.extract_strided_slice %8 {offsets = [1, 0], sizes = [1, 32], strides = [1, 1]} : vector<3x32xf32> to vector<1x32xf32>
    %311 = vector.broadcast %309 : vector<12x1xf32> to vector<12x32xf32>
    %312 = vector.broadcast %310 : vector<1x32xf32> to vector<12x32xf32>
    %313 = arith.mulf %311, %312 : vector<12x32xf32>
    %314 = arith.addf %308, %313 : vector<12x32xf32>
    %315 = vector.extract_strided_slice %303 {offsets = [0, 2], sizes = [12, 1], strides = [1, 1]} : vector<12x3xf32> to vector<12x1xf32>
    %316 = vector.extract_strided_slice %8 {offsets = [2, 0], sizes = [1, 32], strides = [1, 1]} : vector<3x32xf32> to vector<1x32xf32>
    %317 = vector.broadcast %315 : vector<12x1xf32> to vector<12x32xf32>
    %318 = vector.broadcast %316 : vector<1x32xf32> to vector<12x32xf32>
    %319 = arith.mulf %317, %318 : vector<12x32xf32>
    %320 = arith.addf %314, %319 : vector<12x32xf32>
    %321 = tpu.concatenate %302, %320 in 1 : vector<12x32xf32>, vector<12x32xf32> -> vector<12x64xf32>
    %322 = arith.addf %284, %321 : vector<12x64xf32>
    %323 = tpu.concatenate %9, %9 in 1 : vector<1x32xf32>, vector<1x32xf32> -> vector<1x64xf32>
    %324 = vector.broadcast %323 : vector<1x64xf32> to vector<12x64xf32>
    %325 = arith.addf %322, %324 : vector<12x64xf32>
    %326 = vector.extract_strided_slice %20 {offsets = [80, 0], sizes = [32, 6], strides = [1, 1]} : vector<112x7xf32> to vector<32x6xf32>
    %327 = vector.extract_strided_slice %326 {offsets = [0, 0], sizes = [32, 3], strides = [1, 1]} : vector<32x6xf32> to vector<32x3xf32>
    %328 = vector.extract_strided_slice %327 {offsets = [0, 0], sizes = [32, 1], strides = [1, 1]} : vector<32x3xf32> to vector<32x1xf32>
    %329 = vector.broadcast %328 : vector<32x1xf32> to vector<32x32xf32>
    %330 = arith.mulf %329, %86 : vector<32x32xf32>
    %331 = vector.extract_strided_slice %327 {offsets = [0, 1], sizes = [32, 1], strides = [1, 1]} : vector<32x3xf32> to vector<32x1xf32>
    %332 = vector.broadcast %331 : vector<32x1xf32> to vector<32x32xf32>
    %333 = arith.mulf %332, %87 : vector<32x32xf32>
    %334 = arith.addf %330, %333 : vector<32x32xf32>
    %335 = vector.extract_strided_slice %327 {offsets = [0, 2], sizes = [32, 1], strides = [1, 1]} : vector<32x3xf32> to vector<32x1xf32>
    %336 = vector.broadcast %335 : vector<32x1xf32> to vector<32x32xf32>
    %337 = arith.mulf %336, %88 : vector<32x32xf32>
    %338 = arith.addf %334, %337 : vector<32x32xf32>
    %339 = vector.extract_strided_slice %326 {offsets = [0, 3], sizes = [32, 3], strides = [1, 1]} : vector<32x6xf32> to vector<32x3xf32>
    %340 = vector.extract_strided_slice %339 {offsets = [0, 0], sizes = [32, 1], strides = [1, 1]} : vector<32x3xf32> to vector<32x1xf32>
    %341 = vector.broadcast %340 : vector<32x1xf32> to vector<32x32xf32>
    %342 = arith.mulf %341, %86 : vector<32x32xf32>
    %343 = vector.extract_strided_slice %339 {offsets = [0, 1], sizes = [32, 1], strides = [1, 1]} : vector<32x3xf32> to vector<32x1xf32>
    %344 = vector.broadcast %343 : vector<32x1xf32> to vector<32x32xf32>
    %345 = arith.mulf %344, %87 : vector<32x32xf32>
    %346 = arith.addf %342, %345 : vector<32x32xf32>
    %347 = vector.extract_strided_slice %339 {offsets = [0, 2], sizes = [32, 1], strides = [1, 1]} : vector<32x3xf32> to vector<32x1xf32>
    %348 = vector.broadcast %347 : vector<32x1xf32> to vector<32x32xf32>
    %349 = arith.mulf %348, %88 : vector<32x32xf32>
    %350 = arith.addf %346, %349 : vector<32x32xf32>
    %351 = tpu.concatenate %338, %350 in 1 : vector<32x32xf32>, vector<32x32xf32> -> vector<32x64xf32>
    %352 = arith.truncf %351 : vector<32x64xf32> to vector<32x64xbf16>
    %cst_42 = arith.constant dense<0.000000e+00> : vector<10x64xf32>
    %353 = tpu.matmul %68, %352, %cst_42 {dimension_numbers = #tpu.dot_dimension_numbers<[1], [0], [0], [1], [0, 0, 1, 1], [], []>} : vector<10x32xbf16>, vector<32x64xbf16>, vector<10x64xf32> -> vector<10x64xf32>
    %354 = vector.broadcast %67 : vector<10x1xf32> to vector<10x64xf32>
    %355 = arith.mulf %353, %354 : vector<10x64xf32>
    %356 = vector.extract_strided_slice %19 {offsets = [0, 0], sizes = [10, 3], strides = [1, 1]} : vector<10x6xf32> to vector<10x3xf32>
    %357 = vector.extract_strided_slice %356 {offsets = [0, 0], sizes = [10, 1], strides = [1, 1]} : vector<10x3xf32> to vector<10x1xf32>
    %358 = vector.extract_strided_slice %10 {offsets = [0, 0], sizes = [1, 32], strides = [1, 1]} : vector<3x32xf32> to vector<1x32xf32>
    %359 = vector.broadcast %357 : vector<10x1xf32> to vector<10x32xf32>
    %360 = vector.broadcast %358 : vector<1x32xf32> to vector<10x32xf32>
    %361 = arith.mulf %359, %360 : vector<10x32xf32>
    %362 = vector.extract_strided_slice %356 {offsets = [0, 1], sizes = [10, 1], strides = [1, 1]} : vector<10x3xf32> to vector<10x1xf32>
    %363 = vector.extract_strided_slice %10 {offsets = [1, 0], sizes = [1, 32], strides = [1, 1]} : vector<3x32xf32> to vector<1x32xf32>
    %364 = vector.broadcast %362 : vector<10x1xf32> to vector<10x32xf32>
    %365 = vector.broadcast %363 : vector<1x32xf32> to vector<10x32xf32>
    %366 = arith.mulf %364, %365 : vector<10x32xf32>
    %367 = arith.addf %361, %366 : vector<10x32xf32>
    %368 = vector.extract_strided_slice %356 {offsets = [0, 2], sizes = [10, 1], strides = [1, 1]} : vector<10x3xf32> to vector<10x1xf32>
    %369 = vector.extract_strided_slice %10 {offsets = [2, 0], sizes = [1, 32], strides = [1, 1]} : vector<3x32xf32> to vector<1x32xf32>
    %370 = vector.broadcast %368 : vector<10x1xf32> to vector<10x32xf32>
    %371 = vector.broadcast %369 : vector<1x32xf32> to vector<10x32xf32>
    %372 = arith.mulf %370, %371 : vector<10x32xf32>
    %373 = arith.addf %367, %372 : vector<10x32xf32>
    %374 = vector.extract_strided_slice %19 {offsets = [0, 3], sizes = [10, 3], strides = [1, 1]} : vector<10x6xf32> to vector<10x3xf32>
    %375 = vector.extract_strided_slice %374 {offsets = [0, 0], sizes = [10, 1], strides = [1, 1]} : vector<10x3xf32> to vector<10x1xf32>
    %376 = vector.extract_strided_slice %10 {offsets = [0, 0], sizes = [1, 32], strides = [1, 1]} : vector<3x32xf32> to vector<1x32xf32>
    %377 = vector.broadcast %375 : vector<10x1xf32> to vector<10x32xf32>
    %378 = vector.broadcast %376 : vector<1x32xf32> to vector<10x32xf32>
    %379 = arith.mulf %377, %378 : vector<10x32xf32>
    %380 = vector.extract_strided_slice %374 {offsets = [0, 1], sizes = [10, 1], strides = [1, 1]} : vector<10x3xf32> to vector<10x1xf32>
    %381 = vector.extract_strided_slice %10 {offsets = [1, 0], sizes = [1, 32], strides = [1, 1]} : vector<3x32xf32> to vector<1x32xf32>
    %382 = vector.broadcast %380 : vector<10x1xf32> to vector<10x32xf32>
    %383 = vector.broadcast %381 : vector<1x32xf32> to vector<10x32xf32>
    %384 = arith.mulf %382, %383 : vector<10x32xf32>
    %385 = arith.addf %379, %384 : vector<10x32xf32>
    %386 = vector.extract_strided_slice %374 {offsets = [0, 2], sizes = [10, 1], strides = [1, 1]} : vector<10x3xf32> to vector<10x1xf32>
    %387 = vector.extract_strided_slice %10 {offsets = [2, 0], sizes = [1, 32], strides = [1, 1]} : vector<3x32xf32> to vector<1x32xf32>
    %388 = vector.broadcast %386 : vector<10x1xf32> to vector<10x32xf32>
    %389 = vector.broadcast %387 : vector<1x32xf32> to vector<10x32xf32>
    %390 = arith.mulf %388, %389 : vector<10x32xf32>
    %391 = arith.addf %385, %390 : vector<10x32xf32>
    %392 = tpu.concatenate %373, %391 in 1 : vector<10x32xf32>, vector<10x32xf32> -> vector<10x64xf32>
    %393 = arith.addf %355, %392 : vector<10x64xf32>
    %394 = tpu.concatenate %11, %11 in 1 : vector<1x32xf32>, vector<1x32xf32> -> vector<1x64xf32>
    %395 = vector.broadcast %394 : vector<1x64xf32> to vector<10x64xf32>
    %396 = arith.addf %393, %395 : vector<10x64xf32>
    %397 = arith.addf %171, %325 : vector<12x64xf32>
    %cst_43 = arith.constant 5.000000e-01 : f32
    %398 = vector.broadcast %cst_43 : f32 to vector<12x64xf32>
    %399 = arith.mulf %398, %397 : vector<12x64xf32>
    %400 = arith.addf %254, %396 : vector<10x64xf32>
    %cst_44 = arith.constant 5.000000e-01 : f32
    %401 = vector.broadcast %cst_44 : f32 to vector<10x64xf32>
    %402 = arith.mulf %401, %400 : vector<10x64xf32>
    %403 = vector.extract_strided_slice %399 {offsets = [0, 0], sizes = [12, 32], strides = [1, 1]} : vector<12x64xf32> to vector<12x32xf32>
    %404 = vector.extract_strided_slice %399 {offsets = [0, 32], sizes = [12, 32], strides = [1, 1]} : vector<12x64xf32> to vector<12x32xf32>
    %405 = vector.extract_strided_slice %402 {offsets = [0, 0], sizes = [10, 32], strides = [1, 1]} : vector<10x64xf32> to vector<10x32xf32>
    %406 = vector.extract_strided_slice %402 {offsets = [0, 32], sizes = [10, 32], strides = [1, 1]} : vector<10x64xf32> to vector<10x32xf32>
    %cst_45 = arith.constant dense<0.000000e+00> : vector<32xf32>
    %407 = vector.multi_reduction <add>, %403, %cst_45 [0] : vector<12x32xf32> to vector<32xf32>
    %408 = vector.shape_cast %407 : vector<32xf32> to vector<1x32xf32>
    %cst_46 = arith.constant 1.200000e+01 : f32
    %409 = vector.broadcast %cst_46 : f32 to vector<1x32xf32>
    %410 = arith.divf %408, %409 : vector<1x32xf32>
    %cst_47 = arith.constant dense<0.000000e+00> : vector<1x32xf32>
    %411 = tpu.matmul %410, %12, %cst_47 {dimension_numbers = #tpu.dot_dimension_numbers<[1], [0], [0], [1], [0, 0, 1, 1], [], []>} : vector<1x32xf32>, vector<32x32xf32>, vector<1x32xf32> -> vector<1x32xf32>
    %412 = arith.addf %411, %13 : vector<1x32xf32>
    %cst_48 = arith.constant dense<0.000000e+00> : vector<32xf32>
    %413 = vector.multi_reduction <add>, %405, %cst_48 [0] : vector<10x32xf32> to vector<32xf32>
    %414 = vector.shape_cast %413 : vector<32xf32> to vector<1x32xf32>
    %cst_49 = arith.constant 1.000000e+01 : f32
    %415 = vector.broadcast %cst_49 : f32 to vector<1x32xf32>
    %416 = arith.divf %414, %415 : vector<1x32xf32>
    %cst_50 = arith.constant dense<0.000000e+00> : vector<1x32xf32>
    %417 = tpu.matmul %416, %14, %cst_50 {dimension_numbers = #tpu.dot_dimension_numbers<[1], [0], [0], [1], [0, 0, 1, 1], [], []>} : vector<1x32xf32>, vector<32x32xf32>, vector<1x32xf32> -> vector<1x32xf32>
    %418 = arith.addf %417, %15 : vector<1x32xf32>
    %419 = vector.broadcast %412 : vector<1x32xf32> to vector<12x32xf32>
    %420 = arith.mulf %403, %419 : vector<12x32xf32>
    %cst_51 = arith.constant dense<0.000000e+00> : vector<12xf32>
    %421 = vector.multi_reduction <add>, %420, %cst_51 [1] : vector<12x32xf32> to vector<12xf32>
    %422 = vector.shape_cast %421 : vector<12xf32> to vector<12x1xf32>
    %423 = vector.broadcast %412 : vector<1x32xf32> to vector<12x32xf32>
    %424 = arith.mulf %404, %423 : vector<12x32xf32>
    %cst_52 = arith.constant dense<0.000000e+00> : vector<12xf32>
    %425 = vector.multi_reduction <add>, %424, %cst_52 [1] : vector<12x32xf32> to vector<12xf32>
    %426 = vector.shape_cast %425 : vector<12xf32> to vector<12x1xf32>
    %cst_53 = arith.constant 0.000000e+00 : f32
    %427 = vector.broadcast %cst_53 : f32 to vector<12x1xf32>
    %428 = arith.minimumf %422, %427 : vector<12x1xf32>
    %429 = math.absf %422 : vector<12x1xf32>
    %cst_54 = arith.constant 0.000000e+00 : f32
    %430 = vector.broadcast %cst_54 : f32 to vector<12x1xf32>
    %431 = arith.subf %430, %429 : vector<12x1xf32>
    %432 = math.exp %431 : vector<12x1xf32>
    %433 = math.log1p %432 : vector<12x1xf32>
    %434 = arith.subf %428, %433 : vector<12x1xf32>
    %435 = vector.shape_cast %434 : vector<12x1xf32> to vector<1x12x1xf32>
    %cst_55 = arith.constant dense<0.000000e+00> : vector<1xf32>
    %436 = vector.multi_reduction <add>, %435, %cst_55 [1, 2] : vector<1x12x1xf32> to vector<1xf32>
    %437 = vector.shape_cast %436 : vector<1xf32> to vector<1x1x1xf32>
    %438 = vector.extract %437[0, 0, 0] : f32 from vector<1x1x1xf32>
    %cst_56 = arith.constant 1.200000e+01 : f32
    %439 = arith.divf %438, %cst_56 : f32
    %cst_57 = arith.constant 0.000000e+00 : f32
    %440 = arith.subf %cst_57, %439 : f32
    %cst_58 = arith.constant 0.000000e+00 : f32
    %441 = vector.broadcast %cst_58 : f32 to vector<12x1xf32>
    %442 = arith.subf %441, %426 : vector<12x1xf32>
    %cst_59 = arith.constant 0.000000e+00 : f32
    %443 = vector.broadcast %cst_59 : f32 to vector<12x1xf32>
    %444 = arith.minimumf %442, %443 : vector<12x1xf32>
    %445 = math.absf %442 : vector<12x1xf32>
    %cst_60 = arith.constant 0.000000e+00 : f32
    %446 = vector.broadcast %cst_60 : f32 to vector<12x1xf32>
    %447 = arith.subf %446, %445 : vector<12x1xf32>
    %448 = math.exp %447 : vector<12x1xf32>
    %449 = math.log1p %448 : vector<12x1xf32>
    %450 = arith.subf %444, %449 : vector<12x1xf32>
    %451 = vector.shape_cast %450 : vector<12x1xf32> to vector<1x12x1xf32>
    %cst_61 = arith.constant dense<0.000000e+00> : vector<1xf32>
    %452 = vector.multi_reduction <add>, %451, %cst_61 [1, 2] : vector<1x12x1xf32> to vector<1xf32>
    %453 = vector.shape_cast %452 : vector<1xf32> to vector<1x1x1xf32>
    %454 = vector.extract %453[0, 0, 0] : f32 from vector<1x1x1xf32>
    %cst_62 = arith.constant 1.200000e+01 : f32
    %455 = arith.divf %454, %cst_62 : f32
    %456 = arith.subf %440, %455 : f32
    %cst_63 = arith.constant 0.000000e+00 : f32
    %457 = arith.addf %cst_63, %456 : f32
    %458 = vector.broadcast %418 : vector<1x32xf32> to vector<10x32xf32>
    %459 = arith.mulf %405, %458 : vector<10x32xf32>
    %cst_64 = arith.constant dense<0.000000e+00> : vector<10xf32>
    %460 = vector.multi_reduction <add>, %459, %cst_64 [1] : vector<10x32xf32> to vector<10xf32>
    %461 = vector.shape_cast %460 : vector<10xf32> to vector<10x1xf32>
    %462 = vector.broadcast %418 : vector<1x32xf32> to vector<10x32xf32>
    %463 = arith.mulf %406, %462 : vector<10x32xf32>
    %cst_65 = arith.constant dense<0.000000e+00> : vector<10xf32>
    %464 = vector.multi_reduction <add>, %463, %cst_65 [1] : vector<10x32xf32> to vector<10xf32>
    %465 = vector.shape_cast %464 : vector<10xf32> to vector<10x1xf32>
    %cst_66 = arith.constant 0.000000e+00 : f32
    %466 = vector.broadcast %cst_66 : f32 to vector<10x1xf32>
    %467 = arith.minimumf %461, %466 : vector<10x1xf32>
    %468 = math.absf %461 : vector<10x1xf32>
    %cst_67 = arith.constant 0.000000e+00 : f32
    %469 = vector.broadcast %cst_67 : f32 to vector<10x1xf32>
    %470 = arith.subf %469, %468 : vector<10x1xf32>
    %471 = math.exp %470 : vector<10x1xf32>
    %472 = math.log1p %471 : vector<10x1xf32>
    %473 = arith.subf %467, %472 : vector<10x1xf32>
    %474 = vector.shape_cast %473 : vector<10x1xf32> to vector<1x10x1xf32>
    %cst_68 = arith.constant dense<0.000000e+00> : vector<1xf32>
    %475 = vector.multi_reduction <add>, %474, %cst_68 [1, 2] : vector<1x10x1xf32> to vector<1xf32>
    %476 = vector.shape_cast %475 : vector<1xf32> to vector<1x1x1xf32>
    %477 = vector.extract %476[0, 0, 0] : f32 from vector<1x1x1xf32>
    %cst_69 = arith.constant 1.000000e+01 : f32
    %478 = arith.divf %477, %cst_69 : f32
    %cst_70 = arith.constant 0.000000e+00 : f32
    %479 = arith.subf %cst_70, %478 : f32
    %cst_71 = arith.constant 0.000000e+00 : f32
    %480 = vector.broadcast %cst_71 : f32 to vector<10x1xf32>
    %481 = arith.subf %480, %465 : vector<10x1xf32>
    %cst_72 = arith.constant 0.000000e+00 : f32
    %482 = vector.broadcast %cst_72 : f32 to vector<10x1xf32>
    %483 = arith.minimumf %481, %482 : vector<10x1xf32>
    %484 = math.absf %481 : vector<10x1xf32>
    %cst_73 = arith.constant 0.000000e+00 : f32
    %485 = vector.broadcast %cst_73 : f32 to vector<10x1xf32>
    %486 = arith.subf %485, %484 : vector<10x1xf32>
    %487 = math.exp %486 : vector<10x1xf32>
    %488 = math.log1p %487 : vector<10x1xf32>
    %489 = arith.subf %483, %488 : vector<10x1xf32>
    %490 = vector.shape_cast %489 : vector<10x1xf32> to vector<1x10x1xf32>
    %cst_74 = arith.constant dense<0.000000e+00> : vector<1xf32>
    %491 = vector.multi_reduction <add>, %490, %cst_74 [1, 2] : vector<1x10x1xf32> to vector<1xf32>
    %492 = vector.shape_cast %491 : vector<1xf32> to vector<1x1x1xf32>
    %493 = vector.extract %492[0, 0, 0] : f32 from vector<1x1x1xf32>
    %cst_75 = arith.constant 1.000000e+01 : f32
    %494 = arith.divf %493, %cst_75 : f32
    %495 = arith.subf %479, %494 : f32
    %496 = arith.addf %457, %495 : f32
    %c0_76 = arith.constant 0 : index
    %c0_77 = arith.constant 0 : index
    %497 = memref.load %arg5[%c0_76, %c0_77] : memref<1x1xf32, #tpu.memory_space<smem>>
    memref.store %496, %arg5[%c0_76, %c0_77] : memref<1x1xf32, #tpu.memory_space<smem>>
    %cst_78 = arith.constant 0.000000e+00 : f32
    %498 = vector.broadcast %cst_78 : f32 to vector<4x32xf32>
    %499 = tpu.concatenate %403, %498 in 0 : vector<12x32xf32>, vector<4x32xf32> -> vector<16x32xf32>
    %cst_79 = arith.constant 0.000000e+00 : f32
    %500 = vector.broadcast %cst_79 : f32 to vector<6x32xf32>
    %501 = tpu.concatenate %405, %500 in 0 : vector<10x32xf32>, vector<6x32xf32> -> vector<16x32xf32>
    %cst_80 = arith.constant 0.000000e+00 : f32
    %502 = vector.broadcast %cst_80 : f32 to vector<16x64xf32>
    %503 = tpu.concatenate %499, %501, %502 in 1 : vector<16x32xf32>, vector<16x32xf32>, vector<16x64xf32> -> vector<16x128xf32>
    %c0_81 = arith.constant 0 : index
    %c0_82 = arith.constant 0 : index
    %504 = vector.load %arg6[%c0_81, %c0_82] : memref<16x128xf32, #tpu.memory_space<vmem>>, vector<16x128xf32>
    tpu.vector_store %arg6[%c0_81, %c0_82], %503 {strides = array<i32>} : memref<16x128xf32, #tpu.memory_space<vmem>>, vector<16x128xf32>,
    return
  }
}

</mosaic_0001>

<llo_original>
// kernel: dgi_hetero_forward.1
$region0: #{dgi_hetero_forward.1}
  #allocation0 [shape = 'u32[]', space=smem, size = 0x4, offset = 0x4, fixed_abs, tag = 'smem constant byte address 0x4 - core index']
  #allocation1 [shape = 'u32[144,128]{1,0:T(1,128)}', space=vmem, size = 0x12000, scoped, tag = 'internal scratch']
  %s0 = inlined_call_operand.vmem [shape: f32[12,6], index: 0, kind: input, shape index: {}]
  %s1 = inlined_call_operand.vmem [shape: f32[10,6], index: 1, kind: input, shape index: {}]
  %s2 = inlined_call_operand.vmem [shape: f32[112,7], index: 2, kind: input, shape index: {}]
  %s3 = inlined_call_operand.vmem [shape: s32[4,32], index: 3, kind: input, shape index: {}]
  %s4 = inlined_call_operand.vmem [shape: f32[123,96], index: 4, kind: input, shape index: {}]
  %s5 = inlined_call_operand.hbm [shape: f32[1,1], index: 5, kind: output, shape index: {0}]
  %s6 = inlined_call_operand.vmem [shape: f32[16,128], index: 6, kind: output, shape index: {1}]
  %7 = xla_tuple %s5, %s6
  %s8 = sld [smem:[#allocation0]]
  $region38: #{dgi_hetero_forward.1} parent=0
    _
  %s10 = ssub.s32 1, %s8
  %s11 = scalar_select 0, %s10, %s8
  $region1: #{dgi_hetero_forward.1} parent=0
    #allocation2 [shape = 'u8[512]{0}', space=smem, size = 0x200, scoped, tag = 'output window, operand 0, single buffered']
    #allocation3 [shape = 's32[1]{0}', space=sflag, size = 0x4, scoped, tag = 'scoped memory for dgi_hetero_forward.1']
    %12 = vsyncpa [#allocation3], 0
    // Predicated region
    $region2: #{dgi_hetero_forward.1} parent=1 // pred_check
      _
    $region3: #{dgi_hetero_forward.1} parent=1 // pred_check_branch
      %14 = sbr.rel (0) target = $region5
    $region4: #{dgi_hetero_forward.1} parent=1 // pred_region
      _
    $region5: #{dgi_hetero_forward.1} parent=1 // pred_fallthru
      _
    // Predicated region
    $region6: #{dgi_hetero_forward.1} parent=1 // pred_check
      _
    $region7: #{dgi_hetero_forward.1} parent=1 // pred_check_branch
      %16 = sbr.rel (0) target = $region9
    $region8: #{dgi_hetero_forward.1} parent=1 // pred_region
      _
    $region9: #{dgi_hetero_forward.1} parent=1 // pred_fallthru
      _
    // Predicated region
    $region10: #{dgi_hetero_forward.1} parent=1 // pred_check
      _
    $region11: #{dgi_hetero_forward.1} parent=1 // pred_check_branch
      %18 = sbr.rel (0) target = $region13
    $region12: #{dgi_hetero_forward.1} parent=1 // pred_region
      _
    $region13: #{dgi_hetero_forward.1} parent=1 // pred_fallthru
      _
    // Predicated region
    $region14: #{dgi_hetero_forward.1} parent=1 // pred_check
      _
    $region15: #{dgi_hetero_forward.1} parent=1 // pred_check_branch
      %20 = sbr.rel (0) target = $region17
    $region16: #{dgi_hetero_forward.1} parent=1 // pred_region
      _
    $region17: #{dgi_hetero_forward.1} parent=1 // pred_fallthru
      _
    // Predicated region
    $region18: #{dgi_hetero_forward.1} parent=1 // pred_check
      _
    $region19: #{dgi_hetero_forward.1} parent=1 // pred_check_branch
      %22 = sbr.rel (0) target = $region21
    $region20: #{dgi_hetero_forward.1} parent=1 // pred_region
      _
    $region21: #{dgi_hetero_forward.1} parent=1 // pred_fallthru
      _
    %v24 = vld [vmem:[%s4] sm:$0x7]
    %v25 = vld [vmem:[%s4 + $0x3] sm:$0x1]
    %v26 = vld [vmem:[%s4 + $0x4] sm:$0x7]
    %v27 = vld [vmem:[%s4 + $0x7] sm:$0x7]
    %v28 = vld [vmem:[%s4 + $0xa] sm:$0x1]
    %v29 = vld [vmem:[%s4 + $0xb] sm:$0x7]
    %v30 = vld [vmem:[%s4 + $0xe] sm:$0x1]
    %v31 = vld [vmem:[%s4 + $0xf] sm:$0x1]
    %v32 = vld [vmem:[%s4 + $0x10] sm:$0x7]
    %v33 = vld [vmem:[%s4 + $0x13] sm:$0x1]
    %v34 = vld [vmem:[%s4 + $0x14] sm:$0x7]
    %v35 = vld [vmem:[%s4 + $0x17] sm:$0x1]
    %v36 = vld [vmem:[%s4 + $0x18] sm:$0xff]
    %v37 = vld [vmem:[%s4 + $0x20] sm:$0xff]
    %v38 = vld [vmem:[%s4 + $0x28] sm:$0xff]
    %v39 = vld [vmem:[%s4 + $0x30] sm:$0xff]
    %v40 = vld [vmem:[%s4 + $0x38] sm:$0x1]
    %v41 = vld [vmem:[%s4 + $0x39] sm:$0xff]
    %v42 = vld [vmem:[%s4 + $0x41] sm:$0xff]
    %v43 = vld [vmem:[%s4 + $0x49] sm:$0xff]
    %v44 = vld [vmem:[%s4 + $0x51] sm:$0xff]
    %v45 = vld [vmem:[%s4 + $0x59] sm:$0x1]
    %v46 = vld [vmem:[%s4 + $0x5a] sm:$0xff]
    %v47 = vld [vmem:[%s4 + $0x62] sm:$0xff]
    %v48 = vld [vmem:[%s4 + $0x6a] sm:$0xff]
    %v49 = vld [vmem:[%s4 + $0x72] sm:$0xff]
    %v50 = vld [vmem:[%s4 + $0x7a] sm:$0x1]
    %v51 = vld [vmem:[%s0] sm:$0xff]
    %v52 = vld [vmem:[%s0 + $0x8] sm:$0xf]
    %v53 = vld [vmem:[%s1] sm:$0xff]
    %v54 = vld [vmem:[%s1 + $0x8] sm:$0x3]
    %v55 = vld [vmem:[%s2] sm:$0xff]
    %v56 = vld [vmem:[%s2 + $0x8] sm:$0xff]
    %v57 = vld [vmem:[%s2 + $0x10] sm:$0xff]
    %v58 = vld [vmem:[%s2 + $0x18] sm:$0xff]
    %v59 = vld [vmem:[%s2 + $0x20] sm:$0xff]
    %v60 = vld [vmem:[%s2 + $0x28] sm:$0xff]
    %v61 = vld [vmem:[%s2 + $0x30] sm:$0xff]
    %v62 = vld [vmem:[%s2 + $0x38] sm:$0xff]
    %v63 = vld [vmem:[%s2 + $0x40] sm:$0xff]
    %v64 = vld [vmem:[%s2 + $0x48] sm:$0xff]
    %v65 = vld [vmem:[%s2 + $0x50] sm:$0xff]
    %v66 = vld [vmem:[%s2 + $0x58] sm:$0xff]
    %v67 = vld [vmem:[%s2 + $0x60] sm:$0xff]
    %v68 = vld [vmem:[%s2 + $0x68] sm:$0xff]
    %v69 = vld [vmem:[%s3] sm:$0x1]
    %v70 = vlaneseq
    %v71 = vshrl.u32 %v70, 7
    %v72 = vadd.s32 %v71, 8
    %v73 = vlaneseq
    %v74 = vshrl.u32 %v73, 7
    %v75 = vsub.s32 0, %v74
    %v76 = vrot.slane %v69, %v75
    %vm77 = vcmp.eq.s32.totalorder %v71, %v76
    %vm78 = vcmp.eq.s32.totalorder %v72, %v76
    %v79 = vsel %vm77, 1, 0
    %v80 = vsel %vm78, 1, 0
    %v81 = vcvt.s32.f32 %v79
    %v82 = vcvt.s32.f32 %v80
    %vm83 = vcmask 195584
    %v84 = vsel %vm83, %v81, 0.0
    %85 = vadd.xlane.f32.xlu0 %v84
    %v86 = vpop.xlane.xlu0 %85
    %vm87 = vcmask 191488
    %v88 = vsel %vm87, %v82, 0.0
    %89 = vadd.xlane.f32.xlu0 %v88
    %v90 = vpop.xlane.xlu0 %89
    %v91 = vmax.f32 %v86, 1.0
    %v92 = vmax.f32 %v90, 1.0
    %v93 = vrcp.pop %v91
    %v94 = vrcp.pop %v92
    %v95 = vpack.c.bf16 %v82, %v81
    %v96 = vld [vmem:[%s3 + $0x1] sm:$0x1]
    %v97 = vlaneseq
    %v98 = vshrl.u32 %v97, 7
    %v99 = vsub.s32 0, %v98
    %v100 = vrot.slane %v96, %v99
    %vm101 = vcmp.eq.s32.totalorder %v71, %v100
    %vm102 = vcmp.eq.s32.totalorder %v72, %v100
    %v103 = vsel %vm101, 1, 0
    %v104 = vsel %vm102, 1, 0
    %v105 = vcvt.s32.f32 %v103
    %v106 = vcvt.s32.f32 %v104
    %v107 = vsel %vm83, %v105, 0.0
    %108 = vadd.xlane.f32.xlu0 %v107
    %v109 = vpop.xlane.xlu0 %108
    %vm110 = vcmask 189440
    %v111 = vsel %vm110, %v106, 0.0
    %112 = vadd.xlane.f32.xlu0 %v111
    %v113 = vpop.xlane.xlu0 %112
    %v114 = vmax.f32 %v109, 1.0
    %v115 = vmax.f32 %v113, 1.0
    %v116 = vrcp.pop %v114
    %v117 = vrcp.pop %v115
    %v118 = vpack.c.bf16 %v106, %v105
    %v119 = vld [vmem:[%s3 + $0x2] sm:$0x1]
    %v120 = vlaneseq
    %v121 = vshrl.u32 %v120, 7
    %v122 = vsub.s32 0, %v121
    %v123 = vrot.slane %v119, %v122
    %vm124 = vcmp.eq.s32.totalorder %v71, %v123
    %vm125 = vcmp.eq.s32.totalorder %v72, %v123
    %v126 = vsel %vm124, 1, 0
    %v127 = vsel %vm125, 1, 0
    %v128 = vcvt.s32.f32 %v126
    %v129 = vcvt.s32.f32 %v127
    %vm130 = vcmask 261120
    %v131 = vsel %vm130, %v128, 0.0
    %132 = vadd.xlane.f32.xlu0 %v131
    %v133 = vpop.xlane.xlu0 %132
    %vm134 = vcmask 257024
    %v135 = vsel %vm134, %v129, 0.0
    %136 = vadd.xlane.f32.xlu0 %v135
    %v137 = vpop.xlane.xlu0 %136
    %v138 = vmax.f32 %v133, 1.0
    %v139 = vmax.f32 %v137, 1.0
    %v140 = vrcp.pop %v138
    %v141 = vrcp.pop %v139
    %v142 = vpack.c.bf16 %v129, %v128
    %v143 = vld [vmem:[%s3 + $0x3] sm:$0x1]
    %v144 = vlaneseq
    %v145 = vshrl.u32 %v144, 7
    %v146 = vsub.s32 0, %v145
    %v147 = vrot.slane %v143, %v146
    %vm148 = vcmp.eq.s32.totalorder %v71, %v147
    %vm149 = vcmp.eq.s32.totalorder %v72, %v147
    %v150 = vsel %vm148, 1, 0
    %v151 = vsel %vm149, 1, 0
    %v152 = vcvt.s32.f32 %v150
    %v153 = vcvt.s32.f32 %v151
    %v154 = vsel %vm130, %v152, 0.0
    %155 = vadd.xlane.f32.xlu0 %v154
    %v156 = vpop.xlane.xlu0 %155
    %vm157 = vcmask 254976
    %v158 = vsel %vm157, %v153, 0.0
    %159 = vadd.xlane.f32.xlu0 %v158
    %v160 = vpop.xlane.xlu0 %159
    %v161 = vmax.f32 %v156, 1.0
    %v162 = vmax.f32 %v160, 1.0
    %v163 = vrcp.pop %v161
    %v164 = vrcp.pop %v162
    %v165 = vpack.c.bf16 %v153, %v152
    %167 = vset.pattern.permute.xlu0 6
    %168 = vperm.xlu0 %167, %v61
    %v169 = vpop.permute.xlu0 %168
    %172 = vset.pattern.permute.xlu0 6
    %173 = vperm.xlu0 %172, %v62
    %v174 = vpop.permute.xlu0 %173
    %177 = vset.pattern.permute.xlu0 6
    %178 = vperm.xlu0 %177, %v63
    %v179 = vpop.permute.xlu0 %178
    %182 = vset.pattern.permute.xlu0 6
    %183 = vperm.xlu0 %182, %v64
    %v184 = vpop.permute.xlu0 %183
    %187 = vset.pattern.permute.xlu0 6
    %188 = vperm.xlu0 %187, %v65
    %v189 = vpop.permute.xlu0 %188
    %192 = vset.pattern.permute.xlu0 6
    %193 = vperm.xlu0 %192, %v66
    %v194 = vpop.permute.xlu0 %193
    %197 = vset.pattern.permute.xlu0 6
    %198 = vperm.xlu0 %197, %v67
    %v199 = vpop.permute.xlu0 %198
    %202 = vset.pattern.permute.xlu0 6
    %203 = vperm.xlu0 %202, %v68
    %v204 = vpop.permute.xlu0 %203
    %v206 = vlaneseq
    %v207 = vshrl.u32 %v206, 7
    %v208 = vsub.s32 0, %v207
    %v209 = vrot.slane %v30, %v208
    %v210 = vmul.f32 %v169, %v209
    %v211 = vmul.f32 %v174, %v209
    %v212 = vmul.f32 %v179, %v209
    %v213 = vmul.f32 %v184, %v209
    %v214 = vmul.f32 %v189, %v209
    %v215 = vmul.f32 %v194, %v209
    %v216 = vmul.f32 %v199, %v209
    %v217 = vmul.f32 %v204, %v209
    %v218 = vlaneseq
    %v219 = vshrl.u32 %v218, 7
    %v220 = vsub.s32 0, %v219
    %v221 = vrot.slane %v31, %v220
    %v222 = vadd.f32 %v210, %v221
    %v223 = vadd.f32 %v211, %v221
    %v224 = vadd.f32 %v212, %v221
    %v225 = vadd.f32 %v213, %v221
    %v226 = vadd.f32 %v214, %v221
    %v227 = vadd.f32 %v215, %v221
    %v228 = vadd.f32 %v216, %v221
    %v229 = vadd.f32 %v217, %v221
    %v230 = vmax.f32 %v222, 0.0
    %v231 = vmax.f32 %v223, 0.0
    %v232 = vmax.f32 %v224, 0.0
    %v233 = vmax.f32 %v225, 0.0
    %v234 = vmax.f32 %v226, 0.0
    %v235 = vmax.f32 %v227, 0.0
    %v236 = vmax.f32 %v228, 0.0
    %v237 = vmax.f32 %v229, 0.0
    %v238 = vlaneseq
    %v239 = vshrl.u32 %v238, 7
    %v240 = vsub.s32 0, %v239
    %v241 = vrot.slane %v50, %v240
    %v243 = vsel %vm130, %v230, 0
    %v246 = vsel %vm130, %v231, 0
    %v249 = vsel %vm130, %v232, 0
    %v252 = vsel %vm130, %v233, 0
    %v255 = vsel %vm130, %v234, 0
    %v258 = vsel %vm130, %v235, 0
    %v261 = vsel %vm130, %v236, 0
    %v264 = vsel %vm130, %v237, 0
    %266 = vmatprep.subr.mxu0 0.0
    %267 = vmatpush1.msra.mxu0 0.0
    %268 = vmatprep.subr.mxu0 0.0
    %269 = vmatpush1.msra.mxu0 0.0
    %270 = vmatprep.subr.mxu0 0.0
    %271 = vmatpush1.msra.mxu0 0.0
    %272 = vmatprep.subr.mxu0 0.0
    %273 = vmatpush1.msra.mxu0 0.0
    %274 = vmatprep.subr.mxu0 0.0
    %275 = vmatpush1.msra.mxu0 0.0
    %276 = vmatprep.subr.mxu0 0.0
    %277 = vmatpush1.msra.mxu0 0.0
    %278 = vmatprep.subr.mxu0 0.0
    %279 = vmatpush1.msra.mxu0 0.0
    %280 = vmatprep.subr.mxu0 0.0
    %281 = vmatpush1.msra.mxu0 0.0
    %282 = vmatprep.subr.mxu0 0.0
    %283 = vmatpush1.msra.mxu0 0.0
    %284 = vmatprep.subr.mxu0 0.0
    %285 = vmatpush1.msra.mxu0 0.0
    %286 = vmatprep.subr.mxu0 0.0
    %287 = vmatpush1.msra.mxu0 0.0
    %288 = vmatprep.subr.mxu0 0.0
    %289 = vmatpush1.msra.mxu0 0.0
    %290 = vmatprep.subr.mxu0 0.0
    %291 = vmatpush1.msra.mxu0 %v49
    %292 = vmatprep.subr.mxu0 0.0
    %293 = vmatpush1.msra.mxu0 %v48
    %294 = vmatprep.subr.mxu0 0.0
    %295 = vmatpush1.msra.mxu0 %v47
    %296 = vmatprep.subr.mxu0 0.0
    %297 = vmatpush1.msra.mxu0 %v46
    %298 = vmatprep.subr.mxu0 0.0
    %299 = vmatpush2.msra.mxu0 0.0
    %300 = vmatprep.subr.mxu0 0.0
    %301 = vmatpush2.msra.mxu0 0.0
    %302 = vmatprep.subr.mxu0 0.0
    %303 = vmatpush2.msra.mxu0 0.0
    %304 = vmatprep.subr.mxu0 0.0
    %305 = vmatpush2.msra.mxu0 0.0
    %306 = vmatprep.subr.mxu0 0.0
    %307 = vmatpush2.msra.mxu0 0.0
    %308 = vmatprep.subr.mxu0 0.0
    %309 = vmatpush2.msra.mxu0 0.0
    %310 = vmatprep.subr.mxu0 0.0
    %311 = vmatpush2.msra.mxu0 0.0
    %312 = vmatprep.subr.mxu0 0.0
    %313 = vmatpush2.msra.mxu0 0.0
    %314 = vmatprep.subr.mxu0 0.0
    %315 = vmatpush2.msra.mxu0 0.0
    %316 = vmatprep.subr.mxu0 0.0
    %317 = vmatpush2.msra.mxu0 0.0
    %318 = vmatprep.subr.mxu0 0.0
    %319 = vmatpush2.msra.mxu0 0.0
    %320 = vmatprep.subr.mxu0 0.0
    %321 = vmatpush2.msra.mxu0 0.0
    %322 = vmatprep.subr.mxu0 0.0
    %323 = vmatpush2.msra.mxu0 0.0
    %324 = vmatprep.subr.mxu0 0.0
    %325 = vmatpush2.msra.mxu0 0.0
    %326 = vmatprep.subr.mxu0 0.0
    %327 = vmatpush2.msra.mxu0 0.0
    %328 = vmatprep.subr.mxu0 0.0
    %329 = vmatpush2.msra.mxu0 0.0
    %330 = vmatprep.mubr.f32.mxu0 0.0
    %331 = vmatmul.mubr.f32.gmra.mxu0 %v243
    %v332 = vpop.f32.mrf.mxu0
    %v333 = vadd.f32 %v241, %v332
    %v334 = vpop.f32.mrf.mxu0
    %335 = vmatprep.mubr.f32.mxu0 0.0
    %336 = vmatmul.mubr.f32.gmra.mxu0 %v246
    %v337 = vpop.f32.mrf.mxu0
    %v338 = vadd.f32 %v241, %v337
    %v339 = vpop.f32.mrf.mxu0
    %340 = vmatprep.mubr.f32.mxu0 0.0
    %341 = vmatmul.mubr.f32.gmra.mxu0 %v249
    %v342 = vpop.f32.mrf.mxu0
    %v343 = vadd.f32 %v241, %v342
    %v344 = vpop.f32.mrf.mxu0
    %345 = vmatprep.mubr.f32.mxu0 0.0
    %346 = vmatmul.mubr.f32.gmra.mxu0 %v252
    %v347 = vpop.f32.mrf.mxu0
    %v348 = vadd.f32 %v241, %v347
    %v349 = vpop.f32.mrf.mxu0
    %350 = vmatprep.mubr.f32.mxu0 0.0
    %351 = vmatmul.mubr.f32.gmra.mxu0 %v255
    %v352 = vpop.f32.mrf.mxu0
    %v353 = vadd.f32 %v241, %v352
    %v354 = vpop.f32.mrf.mxu0
    %355 = vmatprep.mubr.f32.mxu0 0.0
    %356 = vmatmul.mubr.f32.gmra.mxu0 %v258
    %v357 = vpop.f32.mrf.mxu0
    %v358 = vadd.f32 %v241, %v357
    %v359 = vpop.f32.mrf.mxu0
    %360 = vmatprep.mubr.f32.mxu0 0.0
    %361 = vmatmul.mubr.f32.gmra.mxu0 %v261
    %v362 = vpop.f32.mrf.mxu0
    %v363 = vadd.f32 %v241, %v362
    %v364 = vpop.f32.mrf.mxu0
    %365 = vmatprep.mubr.f32.mxu0 0.0
    %366 = vmatmul.mubr.f32.gmra.mxu0 %v264
    %v367 = vpop.f32.mrf.mxu0
    %v368 = vadd.f32 %v241, %v367
    %v369 = vpop.f32.mrf.mxu0
    %370 = vdwg.mxu0
    %372 = vset.pattern.permute.xlu0 0
    %373 = vperm.xlu0 %372, %v55
    %v374 = vpop.permute.xlu0 %373
    %377 = vset.pattern.permute.xlu0 0
    %378 = vperm.xlu0 %377, %v56
    %v379 = vpop.permute.xlu0 %378
    %382 = vset.pattern.permute.xlu0 0
    %383 = vperm.xlu0 %382, %v57
    %v384 = vpop.permute.xlu0 %383
    %v386 = vlaneseq
    %v387 = vshrl.u32 %v386, 7
    %v388 = vsub.s32 0, %v387
    %v389 = vrot.slane %v24, %v388
    %v390 = vmul.f32 %v374, %v389
    %v391 = vmul.f32 %v379, %v389
    %v392 = vmul.f32 %v384, %v389
    %393 = vset.pattern.permute.xlu0 1
    %394 = vperm.xlu0 %393, %v55
    %v395 = vpop.permute.xlu0 %394
    %397 = vset.pattern.permute.xlu0 1
    %398 = vperm.xlu0 %397, %v56
    %v399 = vpop.permute.xlu0 %398
    %401 = vset.pattern.permute.xlu0 1
    %402 = vperm.xlu0 %401, %v57
    %v403 = vpop.permute.xlu0 %402
    %v405 = vlaneseq
    %v406 = vshrl.u32 %v405, 7
    %v407 = vsub.s32 1, %v406
    %v408 = vrot.slane %v24, %v407
    %v409 = vmul.f32 %v395, %v408
    %v410 = vmul.f32 %v399, %v408
    %v411 = vmul.f32 %v403, %v408
    %v412 = vadd.f32 %v390, %v409
    %v413 = vadd.f32 %v391, %v410
    %v414 = vadd.f32 %v392, %v411
    %415 = vset.pattern.permute.xlu0 2
    %416 = vperm.xlu0 %415, %v55
    %v417 = vpop.permute.xlu0 %416
    %419 = vset.pattern.permute.xlu0 2
    %420 = vperm.xlu0 %419, %v56
    %v421 = vpop.permute.xlu0 %420
    %423 = vset.pattern.permute.xlu0 2
    %424 = vperm.xlu0 %423, %v57
    %v425 = vpop.permute.xlu0 %424
    %v427 = vlaneseq
    %v428 = vshrl.u32 %v427, 7
    %v429 = vsub.s32 2, %v428
    %v430 = vrot.slane %v24, %v429
    %v431 = vmul.f32 %v417, %v430
    %v432 = vmul.f32 %v421, %v430
    %v433 = vmul.f32 %v425, %v430
    %v434 = vadd.f32 %v412, %v431
    %v435 = vadd.f32 %v413, %v432
    %v436 = vadd.f32 %v414, %v433
    %437 = vset.pattern.permute.xlu0 3
    %438 = vperm.xlu0 %437, %v55
    %v439 = vpop.permute.xlu0 %438
    %441 = vset.pattern.permute.xlu0 3
    %442 = vperm.xlu0 %441, %v56
    %v443 = vpop.permute.xlu0 %442
    %445 = vset.pattern.permute.xlu0 3
    %446 = vperm.xlu0 %445, %v57
    %v447 = vpop.permute.xlu0 %446
    %v449 = vmul.f32 %v439, %v389
    %v450 = vmul.f32 %v443, %v389
    %v451 = vmul.f32 %v447, %v389
    %452 = vset.pattern.permute.xlu0 4
    %453 = vperm.xlu0 %452, %v55
    %v454 = vpop.permute.xlu0 %453
    %456 = vset.pattern.permute.xlu0 4
    %457 = vperm.xlu0 %456, %v56
    %v458 = vpop.permute.xlu0 %457
    %460 = vset.pattern.permute.xlu0 4
    %461 = vperm.xlu0 %460, %v57
    %v462 = vpop.permute.xlu0 %461
    %v464 = vmul.f32 %v454, %v408
    %v465 = vmul.f32 %v458, %v408
    %v466 = vmul.f32 %v462, %v408
    %v467 = vadd.f32 %v449, %v464
    %v468 = vadd.f32 %v450, %v465
    %v469 = vadd.f32 %v451, %v466
    %470 = vset.pattern.permute.xlu0 5
    %471 = vperm.xlu0 %470, %v55
    %v472 = vpop.permute.xlu0 %471
    %474 = vset.pattern.permute.xlu0 5
    %475 = vperm.xlu0 %474, %v56
    %v476 = vpop.permute.xlu0 %475
    %478 = vset.pattern.permute.xlu0 5
    %479 = vperm.xlu0 %478, %v57
    %v480 = vpop.permute.xlu0 %479
    %v482 = vmul.f32 %v472, %v430
    %v483 = vmul.f32 %v476, %v430
    %v484 = vmul.f32 %v480, %v430
    %v485 = vadd.f32 %v467, %v482
    %v486 = vadd.f32 %v468, %v483
    %v487 = vadd.f32 %v469, %v484
    %491 = vrot.lane.b32.xlu0 %v485, 32
    %v492 = vpop.permute.xlu0 %491
    %493 = vrot.lane.b32.xlu0 %v486, 32
    %v494 = vpop.permute.xlu0 %493
    %495 = vrot.lane.b32.xlu0 %v487, 32
    %v496 = vpop.permute.xlu0 %495
    %v500 = vsel %vm130, %v434, %v492
    %v501 = vsel %vm130, %v435, %v494
    %v502 = vsel %vm130, %v436, %v496
    %v503 = vpack.c.bf16 %v501, %v500
    %v504 = vpack.c.bf16 %v502, %v502
    %v506 = vsel %vm83, %v95, 0
    %vm508 = vcmask 1043456
    %v510 = vsel %vm508, %v504, 0
    %512 = vmatprep.subr.bf16.mxu0 0
    %513 = vmatpush1.bf16.msra.mxu0 0
    %514 = vmatprep.subr.bf16.mxu0 0
    %515 = vmatpush1.bf16.msra.mxu0 0
    %516 = vmatprep.subr.bf16.mxu0 0
    %517 = vmatpush1.bf16.msra.mxu0 0
    %518 = vmatprep.subr.bf16.mxu0 0
    %519 = vmatpush1.bf16.msra.mxu0 0
    %520 = vmatprep.subr.bf16.mxu0 0
    %521 = vmatpush1.bf16.msra.mxu0 0
    %522 = vmatprep.subr.bf16.mxu0 0
    %523 = vmatpush1.bf16.msra.mxu0 0
    %524 = vmatprep.subr.bf16.mxu0 0
    %525 = vmatpush1.bf16.msra.mxu0 %v510
    %526 = vmatprep.subr.bf16.mxu0 0
    %527 = vmatpush1.bf16.msra.mxu0 %v503
    %528 = vmatprep.subr.bf16.mxu0 0
    %529 = vmatpush2.bf16.msra.mxu0 0
    %530 = vmatprep.subr.bf16.mxu0 0
    %531 = vmatpush2.bf16.msra.mxu0 0
    %532 = vmatprep.subr.bf16.mxu0 0
    %533 = vmatpush2.bf16.msra.mxu0 0
    %534 = vmatprep.subr.bf16.mxu0 0
    %535 = vmatpush2.bf16.msra.mxu0 0
    %536 = vmatprep.subr.bf16.mxu0 0
    %537 = vmatpush2.bf16.msra.mxu0 0
    %538 = vmatprep.subr.bf16.mxu0 0
    %539 = vmatpush2.bf16.msra.mxu0 0
    %540 = vmatprep.subr.bf16.mxu0 0
    %541 = vmatpush2.bf16.msra.mxu0 0
    %542 = vmatprep.subr.bf16.mxu0 0
    %543 = vmatpush2.bf16.msra.mxu0 0
    %544 = vmatprep.mubr.bf16.mxu0 0
    %545 = vmatmul.mubr.bf16.gmra.mxu0 %v506
    %v546 = vpop.f32.mrf.mxu0
    %v547 = vadd.f32 0.0, %v546
    %v548 = vpop.f32.mrf.mxu0
    %v549 = vpop.f32.mrf.mxu0
    %v550 = vadd.f32 0.0, %v549
    %v551 = vpop.f32.mrf.mxu0
    %552 = vdwg.mxu0
    %v553 = vmul.f32 %v547, %v93
    %v554 = vmul.f32 %v550, %v94
    %556 = vset.pattern.permute.xlu0 0
    %557 = vperm.xlu0 %556, %v51
    %v558 = vpop.permute.xlu0 %557
    %561 = vset.pattern.permute.xlu0 0
    %562 = vperm.xlu0 %561, %v52
    %v563 = vpop.permute.xlu0 %562
    %v565 = vlaneseq
    %v566 = vshrl.u32 %v565, 7
    %v567 = vsub.s32 0, %v566
    %v568 = vrot.slane %v26, %v567
    %v569 = vmul.f32 %v558, %v568
    %v570 = vmul.f32 %v563, %v568
    %571 = vset.pattern.permute.xlu0 1
    %572 = vperm.xlu0 %571, %v51
    %v573 = vpop.permute.xlu0 %572
    %575 = vset.pattern.permute.xlu0 1
    %576 = vperm.xlu0 %575, %v52
    %v577 = vpop.permute.xlu0 %576
    %v579 = vlaneseq
    %v580 = vshrl.u32 %v579, 7
    %v581 = vsub.s32 1, %v580
    %v582 = vrot.slane %v26, %v581
    %v583 = vmul.f32 %v573, %v582
    %v584 = vmul.f32 %v577, %v582
    %v585 = vadd.f32 %v569, %v583
    %v586 = vadd.f32 %v570, %v584
    %587 = vset.pattern.permute.xlu0 2
    %588 = vperm.xlu0 %587, %v51
    %v589 = vpop.permute.xlu0 %588
    %591 = vset.pattern.permute.xlu0 2
    %592 = vperm.xlu0 %591, %v52
    %v593 = vpop.permute.xlu0 %592
    %v595 = vlaneseq
    %v596 = vshrl.u32 %v595, 7
    %v597 = vsub.s32 2, %v596
    %v598 = vrot.slane %v26, %v597
    %v599 = vmul.f32 %v589, %v598
    %v600 = vmul.f32 %v593, %v598
    %v601 = vadd.f32 %v585, %v599
    %v602 = vadd.f32 %v586, %v600
    %603 = vset.pattern.permute.xlu0 3
    %604 = vperm.xlu0 %603, %v51
    %v605 = vpop.permute.xlu0 %604
    %607 = vset.pattern.permute.xlu0 3
    %608 = vperm.xlu0 %607, %v52
    %v609 = vpop.permute.xlu0 %608
    %v611 = vmul.f32 %v605, %v568
    %v612 = vmul.f32 %v609, %v568
    %613 = vset.pattern.permute.xlu0 4
    %614 = vperm.xlu0 %613, %v51
    %v615 = vpop.permute.xlu0 %614
    %617 = vset.pattern.permute.xlu0 4
    %618 = vperm.xlu0 %617, %v52
    %v619 = vpop.permute.xlu0 %618
    %v621 = vmul.f32 %v615, %v582
    %v622 = vmul.f32 %v619, %v582
    %v623 = vadd.f32 %v611, %v621
    %v624 = vadd.f32 %v612, %v622
    %625 = vset.pattern.permute.xlu0 5
    %626 = vperm.xlu0 %625, %v51
    %v627 = vpop.permute.xlu0 %626
    %629 = vset.pattern.permute.xlu0 5
    %630 = vperm.xlu0 %629, %v52
    %v631 = vpop.permute.xlu0 %630
    %v633 = vmul.f32 %v627, %v598
    %v634 = vmul.f32 %v631, %v598
    %v635 = vadd.f32 %v623, %v633
    %v636 = vadd.f32 %v624, %v634
    %639 = vrot.lane.b32.xlu0 %v635, 32
    %v640 = vpop.permute.xlu0 %639
    %641 = vrot.lane.b32.xlu0 %v636, 32
    %v642 = vpop.permute.xlu0 %641
    %v645 = vsel %vm130, %v601, %v640
    %v646 = vsel %vm130, %v602, %v642
    %v647 = vadd.f32 %v553, %v645
    %v648 = vadd.f32 %v554, %v646
    %650 = vrot.lane.b32.xlu0 %v25, 32
    %v651 = vpop.permute.xlu0 %650
    %v653 = vsel %vm130, %v25, %v651
    %v654 = vlaneseq
    %v655 = vshrl.u32 %v654, 7
    %v656 = vsub.s32 0, %v655
    %v657 = vrot.slane %v653, %v656
    %v658 = vadd.f32 %v647, %v657
    %v659 = vadd.f32 %v648, %v657
    %661 = vset.pattern.permute.xlu0 0
    %662 = vperm.xlu0 %661, %v58
    %v663 = vpop.permute.xlu0 %662
    %666 = vset.pattern.permute.xlu0 0
    %667 = vperm.xlu0 %666, %v59
    %v668 = vpop.permute.xlu0 %667
    %671 = vset.pattern.permute.xlu0 0
    %672 = vperm.xlu0 %671, %v60
    %v673 = vpop.permute.xlu0 %672
    %v675 = vlaneseq
    %v676 = vshrl.u32 %v675, 7
    %v677 = vsub.s32 0, %v676
    %v678 = vrot.slane %v27, %v677
    %v679 = vmul.f32 %v663, %v678
    %v680 = vmul.f32 %v668, %v678
    %v681 = vmul.f32 %v673, %v678
    %682 = vset.pattern.permute.xlu0 1
    %683 = vperm.xlu0 %682, %v58
    %v684 = vpop.permute.xlu0 %683
    %686 = vset.pattern.permute.xlu0 1
    %687 = vperm.xlu0 %686, %v59
    %v688 = vpop.permute.xlu0 %687
    %690 = vset.pattern.permute.xlu0 1
    %691 = vperm.xlu0 %690, %v60
    %v692 = vpop.permute.xlu0 %691
    %v694 = vlaneseq
    %v695 = vshrl.u32 %v694, 7
    %v696 = vsub.s32 1, %v695
    %v697 = vrot.slane %v27, %v696
    %v698 = vmul.f32 %v684, %v697
    %v699 = vmul.f32 %v688, %v697
    %v700 = vmul.f32 %v692, %v697
    %v701 = vadd.f32 %v679, %v698
    %v702 = vadd.f32 %v680, %v699
    %v703 = vadd.f32 %v681, %v700
    %704 = vset.pattern.permute.xlu0 2
    %705 = vperm.xlu0 %704, %v58
    %v706 = vpop.permute.xlu0 %705
    %708 = vset.pattern.permute.xlu0 2
    %709 = vperm.xlu0 %708, %v59
    %v710 = vpop.permute.xlu0 %709
    %712 = vset.pattern.permute.xlu0 2
    %713 = vperm.xlu0 %712, %v60
    %v714 = vpop.permute.xlu0 %713
    %v716 = vlaneseq
    %v717 = vshrl.u32 %v716, 7
    %v718 = vsub.s32 2, %v717
    %v719 = vrot.slane %v27, %v718
    %v720 = vmul.f32 %v706, %v719
    %v721 = vmul.f32 %v710, %v719
    %v722 = vmul.f32 %v714, %v719
    %v723 = vadd.f32 %v701, %v720
    %v724 = vadd.f32 %v702, %v721
    %v725 = vadd.f32 %v703, %v722
    %726 = vset.pattern.permute.xlu0 3
    %727 = vperm.xlu0 %726, %v58
    %v728 = vpop.permute.xlu0 %727
    %730 = vset.pattern.permute.xlu0 3
    %731 = vperm.xlu0 %730, %v59
    %v732 = vpop.permute.xlu0 %731
    %734 = vset.pattern.permute.xlu0 3
    %735 = vperm.xlu0 %734, %v60
    %v736 = vpop.permute.xlu0 %735
    %v738 = vmul.f32 %v728, %v678
    %v739 = vmul.f32 %v732, %v678
    %v740 = vmul.f32 %v736, %v678
    %741 = vset.pattern.permute.xlu0 4
    %742 = vperm.xlu0 %741, %v58
    %v743 = vpop.permute.xlu0 %742
    %745 = vset.pattern.permute.xlu0 4
    %746 = vperm.xlu0 %745, %v59
    %v747 = vpop.permute.xlu0 %746
    %749 = vset.pattern.permute.xlu0 4
    %750 = vperm.xlu0 %749, %v60
    %v751 = vpop.permute.xlu0 %750
    %v753 = vmul.f32 %v743, %v697
    %v754 = vmul.f32 %v747, %v697
    %v755 = vmul.f32 %v751, %v697
    %v756 = vadd.f32 %v738, %v753
    %v757 = vadd.f32 %v739, %v754
    %v758 = vadd.f32 %v740, %v755
    %759 = vset.pattern.permute.xlu0 5
    %760 = vperm.xlu0 %759, %v58
    %v761 = vpop.permute.xlu0 %760
    %763 = vset.pattern.permute.xlu0 5
    %764 = vperm.xlu0 %763, %v59
    %v765 = vpop.permute.xlu0 %764
    %767 = vset.pattern.permute.xlu0 5
    %768 = vperm.xlu0 %767, %v60
    %v769 = vpop.permute.xlu0 %768
    %v771 = vmul.f32 %v761, %v719
    %v772 = vmul.f32 %v765, %v719
    %v773 = vmul.f32 %v769, %v719
    %v774 = vadd.f32 %v756, %v771
    %v775 = vadd.f32 %v757, %v772
    %v776 = vadd.f32 %v758, %v773
    %780 = vrot.lane.b32.xlu0 %v774, 32
    %v781 = vpop.permute.xlu0 %780
    %782 = vrot.lane.b32.xlu0 %v775, 32
    %v783 = vpop.permute.xlu0 %782
    %784 = vrot.lane.b32.xlu0 %v776, 32
    %v785 = vpop.permute.xlu0 %784
    %v789 = vsel %vm130, %v723, %v781
    %v790 = vsel %vm130, %v724, %v783
    %v791 = vsel %vm130, %v725, %v785
    %v792 = vpack.c.bf16 %v790, %v789
    %v793 = vpack.c.bf16 %v791, %v791
    %v795 = vsel %vm83, %v118, 0
    %v798 = vsel %vm508, %v793, 0
    %800 = vmatprep.subr.bf16.mxu0 0
    %801 = vmatpush1.bf16.msra.mxu0 0
    %802 = vmatprep.subr.bf16.mxu0 0
    %803 = vmatpush1.bf16.msra.mxu0 0
    %804 = vmatprep.subr.bf16.mxu0 0
    %805 = vmatpush1.bf16.msra.mxu0 0
    %806 = vmatprep.subr.bf16.mxu0 0
    %807 = vmatpush1.bf16.msra.mxu0 0
    %808 = vmatprep.subr.bf16.mxu0 0
    %809 = vmatpush1.bf16.msra.mxu0 0
    %810 = vmatprep.subr.bf16.mxu0 0
    %811 = vmatpush1.bf16.msra.mxu0 0
    %812 = vmatprep.subr.bf16.mxu0 0
    %813 = vmatpush1.bf16.msra.mxu0 %v798
    %814 = vmatprep.subr.bf16.mxu0 0
    %815 = vmatpush1.bf16.msra.mxu0 %v792
    %816 = vmatprep.subr.bf16.mxu0 0
    %817 = vmatpush2.bf16.msra.mxu0 0
    %818 = vmatprep.subr.bf16.mxu0 0
    %819 = vmatpush2.bf16.msra.mxu0 0
    %820 = vmatprep.subr.bf16.mxu0 0
    %821 = vmatpush2.bf16.msra.mxu0 0
    %822 = vmatprep.subr.bf16.mxu0 0
    %823 = vmatpush2.bf16.msra.mxu0 0
    %824 = vmatprep.subr.bf16.mxu0 0
    %825 = vmatpush2.bf16.msra.mxu0 0
    %826 = vmatprep.subr.bf16.mxu0 0
    %827 = vmatpush2.bf16.msra.mxu0 0
    %828 = vmatprep.subr.bf16.mxu0 0
    %829 = vmatpush2.bf16.msra.mxu0 0
    %830 = vmatprep.subr.bf16.mxu0 0
    %831 = vmatpush2.bf16.msra.mxu0 0
    %832 = vmatprep.mubr.bf16.mxu0 0
    %833 = vmatmul.mubr.bf16.gmra.mxu0 %v795
    %v834 = vpop.f32.mrf.mxu0
    %v835 = vadd.f32 0.0, %v834
    %v836 = vpop.f32.mrf.mxu0
    %v837 = vpop.f32.mrf.mxu0
    %v838 = vadd.f32 0.0, %v837
    %v839 = vpop.f32.mrf.mxu0
    %840 = vdwg.mxu0
    %v841 = vmul.f32 %v835, %v116
    %v842 = vmul.f32 %v838, %v117
    %844 = vset.pattern.permute.xlu0 0
    %845 = vperm.xlu0 %844, %v53
    %v846 = vpop.permute.xlu0 %845
    %849 = vset.pattern.permute.xlu0 0
    %850 = vperm.xlu0 %849, %v54
    %v851 = vpop.permute.xlu0 %850
    %v853 = vlaneseq
    %v854 = vshrl.u32 %v853, 7
    %v855 = vsub.s32 0, %v854
    %v856 = vrot.slane %v29, %v855
    %v857 = vmul.f32 %v846, %v856
    %v858 = vmul.f32 %v851, %v856
    %859 = vset.pattern.permute.xlu0 1
    %860 = vperm.xlu0 %859, %v53
    %v861 = vpop.permute.xlu0 %860
    %863 = vset.pattern.permute.xlu0 1
    %864 = vperm.xlu0 %863, %v54
    %v865 = vpop.permute.xlu0 %864
    %v867 = vlaneseq
    %v868 = vshrl.u32 %v867, 7
    %v869 = vsub.s32 1, %v868
    %v870 = vrot.slane %v29, %v869
    %v871 = vmul.f32 %v861, %v870
    %v872 = vmul.f32 %v865, %v870
    %v873 = vadd.f32 %v857, %v871
    %v874 = vadd.f32 %v858, %v872
    %875 = vset.pattern.permute.xlu0 2
    %876 = vperm.xlu0 %875, %v53
    %v877 = vpop.permute.xlu0 %876
    %879 = vset.pattern.permute.xlu0 2
    %880 = vperm.xlu0 %879, %v54
    %v881 = vpop.permute.xlu0 %880
    %v883 = vlaneseq
    %v884 = vshrl.u32 %v883, 7
    %v885 = vsub.s32 2, %v884
    %v886 = vrot.slane %v29, %v885
    %v887 = vmul.f32 %v877, %v886
    %v888 = vmul.f32 %v881, %v886
    %v889 = vadd.f32 %v873, %v887
    %v890 = vadd.f32 %v874, %v888
    %891 = vset.pattern.permute.xlu0 3
    %892 = vperm.xlu0 %891, %v53
    %v893 = vpop.permute.xlu0 %892
    %895 = vset.pattern.permute.xlu0 3
    %896 = vperm.xlu0 %895, %v54
    %v897 = vpop.permute.xlu0 %896
    %v899 = vmul.f32 %v893, %v856
    %v900 = vmul.f32 %v897, %v856
    %901 = vset.pattern.permute.xlu0 4
    %902 = vperm.xlu0 %901, %v53
    %v903 = vpop.permute.xlu0 %902
    %905 = vset.pattern.permute.xlu0 4
    %906 = vperm.xlu0 %905, %v54
    %v907 = vpop.permute.xlu0 %906
    %v909 = vmul.f32 %v903, %v870
    %v910 = vmul.f32 %v907, %v870
    %v911 = vadd.f32 %v899, %v909
    %v912 = vadd.f32 %v900, %v910
    %913 = vset.pattern.permute.xlu0 5
    %914 = vperm.xlu0 %913, %v53
    %v915 = vpop.permute.xlu0 %914
    %917 = vset.pattern.permute.xlu0 5
    %918 = vperm.xlu0 %917, %v54
    %v919 = vpop.permute.xlu0 %918
    %v921 = vmul.f32 %v915, %v886
    %v922 = vmul.f32 %v919, %v886
    %v923 = vadd.f32 %v911, %v921
    %v924 = vadd.f32 %v912, %v922
    %927 = vrot.lane.b32.xlu0 %v923, 32
    %v928 = vpop.permute.xlu0 %927
    %929 = vrot.lane.b32.xlu0 %v924, 32
    %v930 = vpop.permute.xlu0 %929
    %v933 = vsel %vm130, %v889, %v928
    %v934 = vsel %vm130, %v890, %v930
    %v935 = vadd.f32 %v841, %v933
    %v936 = vadd.f32 %v842, %v934
    %938 = vrot.lane.b32.xlu0 %v28, 32
    %v939 = vpop.permute.xlu0 %938
    %v941 = vsel %vm130, %v28, %v939
    %v942 = vlaneseq
    %v943 = vshrl.u32 %v942, 7
    %v944 = vsub.s32 0, %v943
    %v945 = vrot.slane %v941, %v944
    %v946 = vadd.f32 %v935, %v945
    %v947 = vadd.f32 %v936, %v945
    %948 = vset.pattern.permute.xlu0 0
    %949 = vperm.xlu0 %948, %v61
    %v950 = vpop.permute.xlu0 %949
    %952 = vset.pattern.permute.xlu0 0
    %953 = vperm.xlu0 %952, %v62
    %v954 = vpop.permute.xlu0 %953
    %956 = vset.pattern.permute.xlu0 0
    %957 = vperm.xlu0 %956, %v63
    %v958 = vpop.permute.xlu0 %957
    %960 = vset.pattern.permute.xlu0 0
    %961 = vperm.xlu0 %960, %v64
    %v962 = vpop.permute.xlu0 %961
    %v964 = vmul.f32 %v950, %v333
    %v965 = vmul.f32 %v954, %v338
    %v966 = vmul.f32 %v958, %v343
    %v967 = vmul.f32 %v962, %v348
    %968 = vset.pattern.permute.xlu0 1
    %969 = vperm.xlu0 %968, %v61
    %v970 = vpop.permute.xlu0 %969
    %972 = vset.pattern.permute.xlu0 1
    %973 = vperm.xlu0 %972, %v62
    %v974 = vpop.permute.xlu0 %973
    %976 = vset.pattern.permute.xlu0 1
    %977 = vperm.xlu0 %976, %v63
    %v978 = vpop.permute.xlu0 %977
    %980 = vset.pattern.permute.xlu0 1
    %981 = vperm.xlu0 %980, %v64
    %v982 = vpop.permute.xlu0 %981
    %v984 = vmul.f32 %v970, %v333
    %v985 = vmul.f32 %v974, %v338
    %v986 = vmul.f32 %v978, %v343
    %v987 = vmul.f32 %v982, %v348
    %992 = vrot.lane.b32.xlu0 %v984, 96
    %v993 = vpop.permute.xlu0 %992
    %994 = vrot.lane.b32.xlu0 %v985, 96
    %v995 = vpop.permute.xlu0 %994
    %996 = vrot.lane.b32.xlu0 %v986, 96
    %v997 = vpop.permute.xlu0 %996
    %998 = vrot.lane.b32.xlu0 %v987, 96
    %v999 = vpop.permute.xlu0 %998
    %v1004 = vadd.f32 %v964, %v993
    %v1005 = vadd.f32 %v965, %v995
    %v1006 = vadd.f32 %v966, %v997
    %v1007 = vadd.f32 %v967, %v999
    %1008 = vset.pattern.permute.xlu0 2
    %1009 = vperm.xlu0 %1008, %v61
    %v1010 = vpop.permute.xlu0 %1009
    %1012 = vset.pattern.permute.xlu0 2
    %1013 = vperm.xlu0 %1012, %v62
    %v1014 = vpop.permute.xlu0 %1013
    %1016 = vset.pattern.permute.xlu0 2
    %1017 = vperm.xlu0 %1016, %v63
    %v1018 = vpop.permute.xlu0 %1017
    %1020 = vset.pattern.permute.xlu0 2
    %1021 = vperm.xlu0 %1020, %v64
    %v1022 = vpop.permute.xlu0 %1021
    %v1024 = vmul.f32 %v1010, %v333
    %v1025 = vmul.f32 %v1014, %v338
    %v1026 = vmul.f32 %v1018, %v343
    %v1027 = vmul.f32 %v1022, %v348
    %1032 = vrot.lane.b32.xlu0 %v1024, 64
    %v1033 = vpop.permute.xlu0 %1032
    %1034 = vrot.lane.b32.xlu0 %v1025, 64
    %v1035 = vpop.permute.xlu0 %1034
    %1036 = vrot.lane.b32.xlu0 %v1026, 64
    %v1037 = vpop.permute.xlu0 %1036
    %1038 = vrot.lane.b32.xlu0 %v1027, 64
    %v1039 = vpop.permute.xlu0 %1038
    %v1044 = vadd.f32 %v1004, %v1033
    %v1045 = vadd.f32 %v1005, %v1035
    %v1046 = vadd.f32 %v1006, %v1037
    %v1047 = vadd.f32 %v1007, %v1039
    %1048 = vset.pattern.permute.xlu0 3
    %1049 = vperm.xlu0 %1048, %v61
    %v1050 = vpop.permute.xlu0 %1049
    %1052 = vset.pattern.permute.xlu0 3
    %1053 = vperm.xlu0 %1052, %v62
    %v1054 = vpop.permute.xlu0 %1053
    %1056 = vset.pattern.permute.xlu0 3
    %1057 = vperm.xlu0 %1056, %v63
    %v1058 = vpop.permute.xlu0 %1057
    %1060 = vset.pattern.permute.xlu0 3
    %1061 = vperm.xlu0 %1060, %v64
    %v1062 = vpop.permute.xlu0 %1061
    %v1064 = vmul.f32 %v1050, %v333
    %v1065 = vmul.f32 %v1054, %v338
    %v1066 = vmul.f32 %v1058, %v343
    %v1067 = vmul.f32 %v1062, %v348
    %1068 = vset.pattern.permute.xlu0 4
    %1069 = vperm.xlu0 %1068, %v61
    %v1070 = vpop.permute.xlu0 %1069
    %1072 = vset.pattern.permute.xlu0 4
    %1073 = vperm.xlu0 %1072, %v62
    %v1074 = vpop.permute.xlu0 %1073
    %1076 = vset.pattern.permute.xlu0 4
    %1077 = vperm.xlu0 %1076, %v63
    %v1078 = vpop.permute.xlu0 %1077
    %1080 = vset.pattern.permute.xlu0 4
    %1081 = vperm.xlu0 %1080, %v64
    %v1082 = vpop.permute.xlu0 %1081
    %v1084 = vmul.f32 %v1070, %v333
    %v1085 = vmul.f32 %v1074, %v338
    %v1086 = vmul.f32 %v1078, %v343
    %v1087 = vmul.f32 %v1082, %v348
    %1092 = vrot.lane.b32.xlu0 %v1084, 96
    %v1093 = vpop.permute.xlu0 %1092
    %1094 = vrot.lane.b32.xlu0 %v1085, 96
    %v1095 = vpop.permute.xlu0 %1094
    %1096 = vrot.lane.b32.xlu0 %v1086, 96
    %v1097 = vpop.permute.xlu0 %1096
    %1098 = vrot.lane.b32.xlu0 %v1087, 96
    %v1099 = vpop.permute.xlu0 %1098
    %v1104 = vadd.f32 %v1064, %v1093
    %v1105 = vadd.f32 %v1065, %v1095
    %v1106 = vadd.f32 %v1066, %v1097
    %v1107 = vadd.f32 %v1067, %v1099
    %1108 = vset.pattern.permute.xlu0 5
    %1109 = vperm.xlu0 %1108, %v61
    %v1110 = vpop.permute.xlu0 %1109
    %1112 = vset.pattern.permute.xlu0 5
    %1113 = vperm.xlu0 %1112, %v62
    %v1114 = vpop.permute.xlu0 %1113
    %1116 = vset.pattern.permute.xlu0 5
    %1117 = vperm.xlu0 %1116, %v63
    %v1118 = vpop.permute.xlu0 %1117
    %1120 = vset.pattern.permute.xlu0 5
    %1121 = vperm.xlu0 %1120, %v64
    %v1122 = vpop.permute.xlu0 %1121
    %v1124 = vmul.f32 %v1110, %v333
    %v1125 = vmul.f32 %v1114, %v338
    %v1126 = vmul.f32 %v1118, %v343
    %v1127 = vmul.f32 %v1122, %v348
    %1132 = vrot.lane.b32.xlu0 %v1124, 64
    %v1133 = vpop.permute.xlu0 %1132
    %1134 = vrot.lane.b32.xlu0 %v1125, 64
    %v1135 = vpop.permute.xlu0 %1134
    %1136 = vrot.lane.b32.xlu0 %v1126, 64
    %v1137 = vpop.permute.xlu0 %1136
    %1138 = vrot.lane.b32.xlu0 %v1127, 64
    %v1139 = vpop.permute.xlu0 %1138
    %v1144 = vadd.f32 %v1104, %v1133
    %v1145 = vadd.f32 %v1105, %v1135
    %v1146 = vadd.f32 %v1106, %v1137
    %v1147 = vadd.f32 %v1107, %v1139
    %1152 = vrot.lane.b32.xlu0 %v1144, 32
    %v1153 = vpop.permute.xlu0 %1152
    %1154 = vrot.lane.b32.xlu0 %v1145, 32
    %v1155 = vpop.permute.xlu0 %1154
    %1156 = vrot.lane.b32.xlu0 %v1146, 32
    %v1157 = vpop.permute.xlu0 %1156
    %1158 = vrot.lane.b32.xlu0 %v1147, 32
    %v1159 = vpop.permute.xlu0 %1158
    %v1164 = vsel %vm130, %v1044, %v1153
    %v1165 = vsel %vm130, %v1045, %v1155
    %v1166 = vsel %vm130, %v1046, %v1157
    %v1167 = vsel %vm130, %v1047, %v1159
    %v1168 = vpack.c.bf16 %v1165, %v1164
    %v1169 = vpack.c.bf16 %v1167, %v1166
    %v1171 = vsel %vm130, %v142, 0
    %1173 = vmatprep.subr.bf16.mxu0 0
    %1174 = vmatpush1.bf16.msra.mxu0 0
    %1175 = vmatprep.subr.bf16.mxu0 0
    %1176 = vmatpush1.bf16.msra.mxu0 0
    %1177 = vmatprep.subr.bf16.mxu0 0
    %1178 = vmatpush1.bf16.msra.mxu0 0
    %1179 = vmatprep.subr.bf16.mxu0 0
    %1180 = vmatpush1.bf16.msra.mxu0 0
    %1181 = vmatprep.subr.bf16.mxu0 0
    %1182 = vmatpush1.bf16.msra.mxu0 0
    %1183 = vmatprep.subr.bf16.mxu0 0
    %1184 = vmatpush1.bf16.msra.mxu0 0
    %1185 = vmatprep.subr.bf16.mxu0 0
    %1186 = vmatpush1.bf16.msra.mxu0 %v1169
    %1187 = vmatprep.subr.bf16.mxu0 0
    %1188 = vmatpush1.bf16.msra.mxu0 %v1168
    %1189 = vmatprep.subr.bf16.mxu0 0
    %1190 = vmatpush2.bf16.msra.mxu0 0
    %1191 = vmatprep.subr.bf16.mxu0 0
    %1192 = vmatpush2.bf16.msra.mxu0 0
    %1193 = vmatprep.subr.bf16.mxu0 0
    %1194 = vmatpush2.bf16.msra.mxu0 0
    %1195 = vmatprep.subr.bf16.mxu0 0
    %1196 = vmatpush2.bf16.msra.mxu0 0
    %1197 = vmatprep.subr.bf16.mxu0 0
    %1198 = vmatpush2.bf16.msra.mxu0 0
    %1199 = vmatprep.subr.bf16.mxu0 0
    %1200 = vmatpush2.bf16.msra.mxu0 0
    %1201 = vmatprep.subr.bf16.mxu0 0
    %1202 = vmatpush2.bf16.msra.mxu0 0
    %1203 = vmatprep.subr.bf16.mxu0 0
    %1204 = vmatpush2.bf16.msra.mxu0 0
    %1205 = vmatprep.mubr.bf16.mxu0 0
    %1206 = vmatmul.mubr.bf16.gmra.mxu0 %v1171
    %v1207 = vpop.f32.mrf.mxu0
    %v1208 = vadd.f32 0.0, %v1207
    %v1209 = vpop.f32.mrf.mxu0
    %v1210 = vpop.f32.mrf.mxu0
    %v1211 = vadd.f32 0.0, %v1210
    %v1212 = vpop.f32.mrf.mxu0
    %1213 = vdwg.mxu0
    %v1214 = vmul.f32 %v1208, %v140
    %v1215 = vmul.f32 %v1211, %v141
    %v1216 = vlaneseq
    %v1217 = vshrl.u32 %v1216, 7
    %v1218 = vsub.s32 0, %v1217
    %v1219 = vrot.slane %v32, %v1218
    %v1220 = vmul.f32 %v558, %v1219
    %v1221 = vmul.f32 %v563, %v1219
    %v1222 = vlaneseq
    %v1223 = vshrl.u32 %v1222, 7
    %v1224 = vsub.s32 1, %v1223
    %v1225 = vrot.slane %v32, %v1224
    %v1226 = vmul.f32 %v573, %v1225
    %v1227 = vmul.f32 %v577, %v1225
    %v1228 = vadd.f32 %v1220, %v1226
    %v1229 = vadd.f32 %v1221, %v1227
    %v1230 = vlaneseq
    %v1231 = vshrl.u32 %v1230, 7
    %v1232 = vsub.s32 2, %v1231
    %v1233 = vrot.slane %v32, %v1232
    %v1234 = vmul.f32 %v589, %v1233
    %v1235 = vmul.f32 %v593, %v1233
    %v1236 = vadd.f32 %v1228, %v1234
    %v1237 = vadd.f32 %v1229, %v1235
    %v1238 = vmul.f32 %v605, %v1219
    %v1239 = vmul.f32 %v609, %v1219
    %v1240 = vmul.f32 %v615, %v1225
    %v1241 = vmul.f32 %v619, %v1225
    %v1242 = vadd.f32 %v1238, %v1240
    %v1243 = vadd.f32 %v1239, %v1241
    %v1244 = vmul.f32 %v627, %v1233
    %v1245 = vmul.f32 %v631, %v1233
    %v1246 = vadd.f32 %v1242, %v1244
    %v1247 = vadd.f32 %v1243, %v1245
    %1250 = vrot.lane.b32.xlu0 %v1246, 32
    %v1251 = vpop.permute.xlu0 %1250
    %1252 = vrot.lane.b32.xlu0 %v1247, 32
    %v1253 = vpop.permute.xlu0 %1252
    %v1256 = vsel %vm130, %v1236, %v1251
    %v1257 = vsel %vm130, %v1237, %v1253
    %v1258 = vadd.f32 %v1214, %v1256
    %v1259 = vadd.f32 %v1215, %v1257
    %1261 = vrot.lane.b32.xlu0 %v33, 32
    %v1262 = vpop.permute.xlu0 %1261
    %v1264 = vsel %vm130, %v33, %v1262
    %v1265 = vlaneseq
    %v1266 = vshrl.u32 %v1265, 7
    %v1267 = vsub.s32 0, %v1266
    %v1268 = vrot.slane %v1264, %v1267
    %v1269 = vadd.f32 %v1258, %v1268
    %v1270 = vadd.f32 %v1259, %v1268
    %1271 = vset.pattern.permute.xlu0 0
    %1272 = vperm.xlu0 %1271, %v65
    %v1273 = vpop.permute.xlu0 %1272
    %1275 = vset.pattern.permute.xlu0 0
    %1276 = vperm.xlu0 %1275, %v66
    %v1277 = vpop.permute.xlu0 %1276
    %1279 = vset.pattern.permute.xlu0 0
    %1280 = vperm.xlu0 %1279, %v67
    %v1281 = vpop.permute.xlu0 %1280
    %1283 = vset.pattern.permute.xlu0 0
    %1284 = vperm.xlu0 %1283, %v68
    %v1285 = vpop.permute.xlu0 %1284
    %v1287 = vmul.f32 %v1273, %v353
    %v1288 = vmul.f32 %v1277, %v358
    %v1289 = vmul.f32 %v1281, %v363
    %v1290 = vmul.f32 %v1285, %v368
    %1291 = vset.pattern.permute.xlu0 1
    %1292 = vperm.xlu0 %1291, %v65
    %v1293 = vpop.permute.xlu0 %1292
    %1295 = vset.pattern.permute.xlu0 1
    %1296 = vperm.xlu0 %1295, %v66
    %v1297 = vpop.permute.xlu0 %1296
    %1299 = vset.pattern.permute.xlu0 1
    %1300 = vperm.xlu0 %1299, %v67
    %v1301 = vpop.permute.xlu0 %1300
    %1303 = vset.pattern.permute.xlu0 1
    %1304 = vperm.xlu0 %1303, %v68
    %v1305 = vpop.permute.xlu0 %1304
    %v1307 = vmul.f32 %v1293, %v353
    %v1308 = vmul.f32 %v1297, %v358
    %v1309 = vmul.f32 %v1301, %v363
    %v1310 = vmul.f32 %v1305, %v368
    %1315 = vrot.lane.b32.xlu0 %v1307, 96
    %v1316 = vpop.permute.xlu0 %1315
    %1317 = vrot.lane.b32.xlu0 %v1308, 96
    %v1318 = vpop.permute.xlu0 %1317
    %1319 = vrot.lane.b32.xlu0 %v1309, 96
    %v1320 = vpop.permute.xlu0 %1319
    %1321 = vrot.lane.b32.xlu0 %v1310, 96
    %v1322 = vpop.permute.xlu0 %1321
    %v1327 = vadd.f32 %v1287, %v1316
    %v1328 = vadd.f32 %v1288, %v1318
    %v1329 = vadd.f32 %v1289, %v1320
    %v1330 = vadd.f32 %v1290, %v1322
    %1331 = vset.pattern.permute.xlu0 2
    %1332 = vperm.xlu0 %1331, %v65
    %v1333 = vpop.permute.xlu0 %1332
    %1335 = vset.pattern.permute.xlu0 2
    %1336 = vperm.xlu0 %1335, %v66
    %v1337 = vpop.permute.xlu0 %1336
    %1339 = vset.pattern.permute.xlu0 2
    %1340 = vperm.xlu0 %1339, %v67
    %v1341 = vpop.permute.xlu0 %1340
    %1343 = vset.pattern.permute.xlu0 2
    %1344 = vperm.xlu0 %1343, %v68
    %v1345 = vpop.permute.xlu0 %1344
    %v1347 = vmul.f32 %v1333, %v353
    %v1348 = vmul.f32 %v1337, %v358
    %v1349 = vmul.f32 %v1341, %v363
    %v1350 = vmul.f32 %v1345, %v368
    %1355 = vrot.lane.b32.xlu0 %v1347, 64
    %v1356 = vpop.permute.xlu0 %1355
    %1357 = vrot.lane.b32.xlu0 %v1348, 64
    %v1358 = vpop.permute.xlu0 %1357
    %1359 = vrot.lane.b32.xlu0 %v1349, 64
    %v1360 = vpop.permute.xlu0 %1359
    %1361 = vrot.lane.b32.xlu0 %v1350, 64
    %v1362 = vpop.permute.xlu0 %1361
    %v1367 = vadd.f32 %v1327, %v1356
    %v1368 = vadd.f32 %v1328, %v1358
    %v1369 = vadd.f32 %v1329, %v1360
    %v1370 = vadd.f32 %v1330, %v1362
    %1371 = vset.pattern.permute.xlu0 3
    %1372 = vperm.xlu0 %1371, %v65
    %v1373 = vpop.permute.xlu0 %1372
    %1375 = vset.pattern.permute.xlu0 3
    %1376 = vperm.xlu0 %1375, %v66
    %v1377 = vpop.permute.xlu0 %1376
    %1379 = vset.pattern.permute.xlu0 3
    %1380 = vperm.xlu0 %1379, %v67
    %v1381 = vpop.permute.xlu0 %1380
    %1383 = vset.pattern.permute.xlu0 3
    %1384 = vperm.xlu0 %1383, %v68
    %v1385 = vpop.permute.xlu0 %1384
    %v1387 = vmul.f32 %v1373, %v353
    %v1388 = vmul.f32 %v1377, %v358
    %v1389 = vmul.f32 %v1381, %v363
    %v1390 = vmul.f32 %v1385, %v368
    %1391 = vset.pattern.permute.xlu0 4
    %1392 = vperm.xlu0 %1391, %v65
    %v1393 = vpop.permute.xlu0 %1392
    %1395 = vset.pattern.permute.xlu0 4
    %1396 = vperm.xlu0 %1395, %v66
    %v1397 = vpop.permute.xlu0 %1396
    %1399 = vset.pattern.permute.xlu0 4
    %1400 = vperm.xlu0 %1399, %v67
    %v1401 = vpop.permute.xlu0 %1400
    %1403 = vset.pattern.permute.xlu0 4
    %1404 = vperm.xlu0 %1403, %v68
    %v1405 = vpop.permute.xlu0 %1404
    %v1407 = vmul.f32 %v1393, %v353
    %v1408 = vmul.f32 %v1397, %v358
    %v1409 = vmul.f32 %v1401, %v363
    %v1410 = vmul.f32 %v1405, %v368
    %1415 = vrot.lane.b32.xlu0 %v1407, 96
    %v1416 = vpop.permute.xlu0 %1415
    %1417 = vrot.lane.b32.xlu0 %v1408, 96
    %v1418 = vpop.permute.xlu0 %1417
    %1419 = vrot.lane.b32.xlu0 %v1409, 96
    %v1420 = vpop.permute.xlu0 %1419
    %1421 = vrot.lane.b32.xlu0 %v1410, 96
    %v1422 = vpop.permute.xlu0 %1421
    %v1427 = vadd.f32 %v1387, %v1416
    %v1428 = vadd.f32 %v1388, %v1418
    %v1429 = vadd.f32 %v1389, %v1420
    %v1430 = vadd.f32 %v1390, %v1422
    %1431 = vset.pattern.permute.xlu0 5
    %1432 = vperm.xlu0 %1431, %v65
    %v1433 = vpop.permute.xlu0 %1432
    %1435 = vset.pattern.permute.xlu0 5
    %1436 = vperm.xlu0 %1435, %v66
    %v1437 = vpop.permute.xlu0 %1436
    %1439 = vset.pattern.permute.xlu0 5
    %1440 = vperm.xlu0 %1439, %v67
    %v1441 = vpop.permute.xlu0 %1440
    %1443 = vset.pattern.permute.xlu0 5
    %1444 = vperm.xlu0 %1443, %v68
    %v1445 = vpop.permute.xlu0 %1444
    %v1447 = vmul.f32 %v1433, %v353
    %v1448 = vmul.f32 %v1437, %v358
    %v1449 = vmul.f32 %v1441, %v363
    %v1450 = vmul.f32 %v1445, %v368
    %1455 = vrot.lane.b32.xlu0 %v1447, 64
    %v1456 = vpop.permute.xlu0 %1455
    %1457 = vrot.lane.b32.xlu0 %v1448, 64
    %v1458 = vpop.permute.xlu0 %1457
    %1459 = vrot.lane.b32.xlu0 %v1449, 64
    %v1460 = vpop.permute.xlu0 %1459
    %1461 = vrot.lane.b32.xlu0 %v1450, 64
    %v1462 = vpop.permute.xlu0 %1461
    %v1467 = vadd.f32 %v1427, %v1456
    %v1468 = vadd.f32 %v1428, %v1458
    %v1469 = vadd.f32 %v1429, %v1460
    %v1470 = vadd.f32 %v1430, %v1462
    %1475 = vrot.lane.b32.xlu0 %v1467, 32
    %v1476 = vpop.permute.xlu0 %1475
    %1477 = vrot.lane.b32.xlu0 %v1468, 32
    %v1478 = vpop.permute.xlu0 %1477
    %1479 = vrot.lane.b32.xlu0 %v1469, 32
    %v1480 = vpop.permute.xlu0 %1479
    %1481 = vrot.lane.b32.xlu0 %v1470, 32
    %v1482 = vpop.permute.xlu0 %1481
    %v1487 = vsel %vm130, %v1367, %v1476
    %v1488 = vsel %vm130, %v1368, %v1478
    %v1489 = vsel %vm130, %v1369, %v1480
    %v1490 = vsel %vm130, %v1370, %v1482
    %v1491 = vpack.c.bf16 %v1488, %v1487
    %v1492 = vpack.c.bf16 %v1490, %v1489
    %v1494 = vsel %vm130, %v165, 0
    %1496 = vmatprep.subr.bf16.mxu0 0
    %1497 = vmatpush1.bf16.msra.mxu0 0
    %1498 = vmatprep.subr.bf16.mxu0 0
    %1499 = vmatpush1.bf16.msra.mxu0 0
    %1500 = vmatprep.subr.bf16.mxu0 0
    %1501 = vmatpush1.bf16.msra.mxu0 0
    %1502 = vmatprep.subr.bf16.mxu0 0
    %1503 = vmatpush1.bf16.msra.mxu0 0
    %1504 = vmatprep.subr.bf16.mxu0 0
    %1505 = vmatpush1.bf16.msra.mxu0 0
    %1506 = vmatprep.subr.bf16.mxu0 0
    %1507 = vmatpush1.bf16.msra.mxu0 0
    %1508 = vmatprep.subr.bf16.mxu0 0
    %1509 = vmatpush1.bf16.msra.mxu0 %v1492
    %1510 = vmatprep.subr.bf16.mxu0 0
    %1511 = vmatpush1.bf16.msra.mxu0 %v1491
    %1512 = vmatprep.subr.bf16.mxu0 0
    %1513 = vmatpush2.bf16.msra.mxu0 0
    %1514 = vmatprep.subr.bf16.mxu0 0
    %1515 = vmatpush2.bf16.msra.mxu0 0
    %1516 = vmatprep.subr.bf16.mxu0 0
    %1517 = vmatpush2.bf16.msra.mxu0 0
    %1518 = vmatprep.subr.bf16.mxu0 0
    %1519 = vmatpush2.bf16.msra.mxu0 0
    %1520 = vmatprep.subr.bf16.mxu0 0
    %1521 = vmatpush2.bf16.msra.mxu0 0
    %1522 = vmatprep.subr.bf16.mxu0 0
    %1523 = vmatpush2.bf16.msra.mxu0 0
    %1524 = vmatprep.subr.bf16.mxu0 0
    %1525 = vmatpush2.bf16.msra.mxu0 0
    %1526 = vmatprep.subr.bf16.mxu0 0
    %1527 = vmatpush2.bf16.msra.mxu0 0
    %1528 = vmatprep.mubr.bf16.mxu0 0
    %1529 = vmatmul.mubr.bf16.gmra.mxu0 %v1494
    %v1530 = vpop.f32.mrf.mxu0
    %v1531 = vadd.f32 0.0, %v1530
    %v1532 = vpop.f32.mrf.mxu0
    %v1533 = vpop.f32.mrf.mxu0
    %v1534 = vadd.f32 0.0, %v1533
    %v1535 = vpop.f32.mrf.mxu0
    %1536 = vdwg.mxu0
    %v1537 = vmul.f32 %v1531, %v163
    %v1538 = vmul.f32 %v1534, %v164
    %v1539 = vlaneseq
    %v1540 = vshrl.u32 %v1539, 7
    %v1541 = vsub.s32 0, %v1540
    %v1542 = vrot.slane %v34, %v1541
    %v1543 = vmul.f32 %v846, %v1542
    %v1544 = vmul.f32 %v851, %v1542
    %v1545 = vlaneseq
    %v1546 = vshrl.u32 %v1545, 7
    %v1547 = vsub.s32 1, %v1546
    %v1548 = vrot.slane %v34, %v1547
    %v1549 = vmul.f32 %v861, %v1548
    %v1550 = vmul.f32 %v865, %v1548
    %v1551 = vadd.f32 %v1543, %v1549
    %v1552 = vadd.f32 %v1544, %v1550
    %v1553 = vlaneseq
    %v1554 = vshrl.u32 %v1553, 7
    %v1555 = vsub.s32 2, %v1554
    %v1556 = vrot.slane %v34, %v1555
    %v1557 = vmul.f32 %v877, %v1556
    %v1558 = vmul.f32 %v881, %v1556
    %v1559 = vadd.f32 %v1551, %v1557
    %v1560 = vadd.f32 %v1552, %v1558
    %v1561 = vmul.f32 %v893, %v1542
    %v1562 = vmul.f32 %v897, %v1542
    %v1563 = vmul.f32 %v903, %v1548
    %v1564 = vmul.f32 %v907, %v1548
    %v1565 = vadd.f32 %v1561, %v1563
    %v1566 = vadd.f32 %v1562, %v1564
    %v1567 = vmul.f32 %v915, %v1556
    %v1568 = vmul.f32 %v919, %v1556
    %v1569 = vadd.f32 %v1565, %v1567
    %v1570 = vadd.f32 %v1566, %v1568
    %1573 = vrot.lane.b32.xlu0 %v1569, 32
    %v1574 = vpop.permute.xlu0 %1573
    %1575 = vrot.lane.b32.xlu0 %v1570, 32
    %v1576 = vpop.permute.xlu0 %1575
    %v1579 = vsel %vm130, %v1559, %v1574
    %v1580 = vsel %vm130, %v1560, %v1576
    %v1581 = vadd.f32 %v1537, %v1579
    %v1582 = vadd.f32 %v1538, %v1580
    %1584 = vrot.lane.b32.xlu0 %v35, 32
    %v1585 = vpop.permute.xlu0 %1584
    %v1587 = vsel %vm130, %v35, %v1585
    %v1588 = vlaneseq
    %v1589 = vshrl.u32 %v1588, 7
    %v1590 = vsub.s32 0, %v1589
    %v1591 = vrot.slane %v1587, %v1590
    %v1592 = vadd.f32 %v1581, %v1591
    %v1593 = vadd.f32 %v1582, %v1591
    %v1594 = vadd.f32 %v658, %v1269
    %v1595 = vadd.f32 %v659, %v1270
    %v1596 = vmul.f32 %v1594, 0.5
    %v1597 = vmul.f32 %v1595, 0.5
    %v1598 = vadd.f32 %v946, %v1592
    %v1599 = vadd.f32 %v947, %v1593
    %v1600 = vmul.f32 %v1598, 0.5
    %v1601 = vmul.f32 %v1599, 0.5
    %v1602 = vsel %vm130, %v1596, 0.0
    %v1603 = vsel %vm134, %v1597, 0.0
    %v1604 = vadd.f32 %v1602, %v1603
    %v1605 = vrot.slane %v1604, 4
    %v1606 = vadd.f32 %v1604, %v1605
    %v1607 = vrot.slane %v1606, 2
    %v1608 = vadd.f32 %v1606, %v1607
    %v1609 = vrot.slane %v1608, 1
    %v1610 = vadd.f32 %v1608, %v1609
    %v1611 = vrcp.pop 12.0
    %v1612 = vmul.f32 %v1610, %v1611
    %v1614 = vsel %vm130, %v1612, 0
    %1616 = vmatprep.subr.mxu0 0.0
    %1617 = vmatpush1.msra.mxu0 0.0
    %1618 = vmatprep.subr.mxu0 0.0
    %1619 = vmatpush1.msra.mxu0 0.0
    %1620 = vmatprep.subr.mxu0 0.0
    %1621 = vmatpush1.msra.mxu0 0.0
    %1622 = vmatprep.subr.mxu0 0.0
    %1623 = vmatpush1.msra.mxu0 0.0
    %1624 = vmatprep.subr.mxu0 0.0
    %1625 = vmatpush1.msra.mxu0 0.0
    %1626 = vmatprep.subr.mxu0 0.0
    %1627 = vmatpush1.msra.mxu0 0.0
    %1628 = vmatprep.subr.mxu0 0.0
    %1629 = vmatpush1.msra.mxu0 0.0
    %1630 = vmatprep.subr.mxu0 0.0
    %1631 = vmatpush1.msra.mxu0 0.0
    %1632 = vmatprep.subr.mxu0 0.0
    %1633 = vmatpush1.msra.mxu0 0.0
    %1634 = vmatprep.subr.mxu0 0.0
    %1635 = vmatpush1.msra.mxu0 0.0
    %1636 = vmatprep.subr.mxu0 0.0
    %1637 = vmatpush1.msra.mxu0 0.0
    %1638 = vmatprep.subr.mxu0 0.0
    %1639 = vmatpush1.msra.mxu0 0.0
    %1640 = vmatprep.subr.mxu0 0.0
    %1641 = vmatpush1.msra.mxu0 %v39
    %1642 = vmatprep.subr.mxu0 0.0
    %1643 = vmatpush1.msra.mxu0 %v38
    %1644 = vmatprep.subr.mxu0 0.0
    %1645 = vmatpush1.msra.mxu0 %v37
    %1646 = vmatprep.subr.mxu0 0.0
    %1647 = vmatpush1.msra.mxu0 %v36
    %1648 = vmatprep.subr.mxu0 0.0
    %1649 = vmatpush2.msra.mxu0 0.0
    %1650 = vmatprep.subr.mxu0 0.0
    %1651 = vmatpush2.msra.mxu0 0.0
    %1652 = vmatprep.subr.mxu0 0.0
    %1653 = vmatpush2.msra.mxu0 0.0
    %1654 = vmatprep.subr.mxu0 0.0
    %1655 = vmatpush2.msra.mxu0 0.0
    %1656 = vmatprep.subr.mxu0 0.0
    %1657 = vmatpush2.msra.mxu0 0.0
    %1658 = vmatprep.subr.mxu0 0.0
    %1659 = vmatpush2.msra.mxu0 0.0
    %1660 = vmatprep.subr.mxu0 0.0
    %1661 = vmatpush2.msra.mxu0 0.0
    %1662 = vmatprep.subr.mxu0 0.0
    %1663 = vmatpush2.msra.mxu0 0.0
    %1664 = vmatprep.subr.mxu0 0.0
    %1665 = vmatpush2.msra.mxu0 0.0
    %1666 = vmatprep.subr.mxu0 0.0
    %1667 = vmatpush2.msra.mxu0 0.0
    %1668 = vmatprep.subr.mxu0 0.0
    %1669 = vmatpush2.msra.mxu0 0.0
    %1670 = vmatprep.subr.mxu0 0.0
    %1671 = vmatpush2.msra.mxu0 0.0
    %1672 = vmatprep.subr.mxu0 0.0
    %1673 = vmatpush2.msra.mxu0 0.0
    %1674 = vmatprep.subr.mxu0 0.0
    %1675 = vmatpush2.msra.mxu0 0.0
    %1676 = vmatprep.subr.mxu0 0.0
    %1677 = vmatpush2.msra.mxu0 0.0
    %1678 = vmatprep.subr.mxu0 0.0
    %1679 = vmatpush2.msra.mxu0 0.0
    %1680 = vmatprep.mubr.f32.mxu0 0.0
    %1681 = vmatmul.mubr.f32.gmra.mxu0 %v1614
    %v1682 = vpop.f32.mrf.mxu0
    %v1683 = vadd.f32 %v40, %v1682
    %v1684 = vpop.f32.mrf.mxu0
    %1685 = vdwg.mxu0
    %v1686 = vsel %vm130, %v1600, 0.0
    %v1687 = vsel %vm157, %v1601, 0.0
    %v1688 = vadd.f32 %v1686, %v1687
    %v1689 = vrot.slane %v1688, 4
    %v1690 = vadd.f32 %v1688, %v1689
    %v1691 = vrot.slane %v1690, 2
    %v1692 = vadd.f32 %v1690, %v1691
    %v1693 = vrot.slane %v1692, 1
    %v1694 = vadd.f32 %v1692, %v1693
    %v1695 = vrcp.pop 10.0
    %v1696 = vmul.f32 %v1694, %v1695
    %v1698 = vsel %vm130, %v1696, 0
    %1700 = vmatprep.subr.mxu0 0.0
    %1701 = vmatpush1.msra.mxu0 0.0
    %1702 = vmatprep.subr.mxu0 0.0
    %1703 = vmatpush1.msra.mxu0 0.0
    %1704 = vmatprep.subr.mxu0 0.0
    %1705 = vmatpush1.msra.mxu0 0.0
    %1706 = vmatprep.subr.mxu0 0.0
    %1707 = vmatpush1.msra.mxu0 0.0
    %1708 = vmatprep.subr.mxu0 0.0
    %1709 = vmatpush1.msra.mxu0 0.0
    %1710 = vmatprep.subr.mxu0 0.0
    %1711 = vmatpush1.msra.mxu0 0.0
    %1712 = vmatprep.subr.mxu0 0.0
    %1713 = vmatpush1.msra.mxu0 0.0
    %1714 = vmatprep.subr.mxu0 0.0
    %1715 = vmatpush1.msra.mxu0 0.0
    %1716 = vmatprep.subr.mxu0 0.0
    %1717 = vmatpush1.msra.mxu0 0.0
    %1718 = vmatprep.subr.mxu0 0.0
    %1719 = vmatpush1.msra.mxu0 0.0
    %1720 = vmatprep.subr.mxu0 0.0
    %1721 = vmatpush1.msra.mxu0 0.0
    %1722 = vmatprep.subr.mxu0 0.0
    %1723 = vmatpush1.msra.mxu0 0.0
    %1724 = vmatprep.subr.mxu0 0.0
    %1725 = vmatpush1.msra.mxu0 %v44
    %1726 = vmatprep.subr.mxu0 0.0
    %1727 = vmatpush1.msra.mxu0 %v43
    %1728 = vmatprep.subr.mxu0 0.0
    %1729 = vmatpush1.msra.mxu0 %v42
    %1730 = vmatprep.subr.mxu0 0.0
    %1731 = vmatpush1.msra.mxu0 %v41
    %1732 = vmatprep.subr.mxu0 0.0
    %1733 = vmatpush2.msra.mxu0 0.0
    %1734 = vmatprep.subr.mxu0 0.0
    %1735 = vmatpush2.msra.mxu0 0.0
    %1736 = vmatprep.subr.mxu0 0.0
    %1737 = vmatpush2.msra.mxu0 0.0
    %1738 = vmatprep.subr.mxu0 0.0
    %1739 = vmatpush2.msra.mxu0 0.0
    %1740 = vmatprep.subr.mxu0 0.0
    %1741 = vmatpush2.msra.mxu0 0.0
    %1742 = vmatprep.subr.mxu0 0.0
    %1743 = vmatpush2.msra.mxu0 0.0
    %1744 = vmatprep.subr.mxu0 0.0
    %1745 = vmatpush2.msra.mxu0 0.0
    %1746 = vmatprep.subr.mxu0 0.0
    %1747 = vmatpush2.msra.mxu0 0.0
    %1748 = vmatprep.subr.mxu0 0.0
    %1749 = vmatpush2.msra.mxu0 0.0
    %1750 = vmatprep.subr.mxu0 0.0
    %1751 = vmatpush2.msra.mxu0 0.0
    %1752 = vmatprep.subr.mxu0 0.0
    %1753 = vmatpush2.msra.mxu0 0.0
    %1754 = vmatprep.subr.mxu0 0.0
    %1755 = vmatpush2.msra.mxu0 0.0
    %1756 = vmatprep.subr.mxu0 0.0
    %1757 = vmatpush2.msra.mxu0 0.0
    %1758 = vmatprep.subr.mxu0 0.0
    %1759 = vmatpush2.msra.mxu0 0.0
    %1760 = vmatprep.subr.mxu0 0.0
    %1761 = vmatpush2.msra.mxu0 0.0
    %1762 = vmatprep.subr.mxu0 0.0
    %1763 = vmatpush2.msra.mxu0 0.0
    %1764 = vmatprep.mubr.f32.mxu0 0.0
    %1765 = vmatmul.mubr.f32.gmra.mxu0 %v1698
    %v1766 = vpop.f32.mrf.mxu0
    %v1767 = vadd.f32 %v45, %v1766
    %v1768 = vpop.f32.mrf.mxu0
    %1769 = vdwg.mxu0
    %v1770 = vlaneseq
    %v1771 = vshrl.u32 %v1770, 7
    %v1772 = vsub.s32 0, %v1771
    %v1773 = vrot.slane %v1683, %v1772
    %v1774 = vmul.f32 %v1596, %v1773
    %v1775 = vmul.f32 %v1597, %v1773
    %v1776 = vsel %vm130, %v1774, 0.0
    %1777 = vadd.xlane.f32.xlu0 %v1776
    %v1778 = vpop.xlane.xlu0 %1777
    %v1779 = vsel %vm134, %v1775, 0.0
    %1780 = vadd.xlane.f32.xlu0 %v1779
    %v1781 = vpop.xlane.xlu0 %1780
    %1783 = vrot.lane.b32.xlu0 %v1773, 32
    %v1784 = vpop.permute.xlu0 %1783
    %v1786 = vmul.f32 %v1596, %v1784
    %v1787 = vmul.f32 %v1597, %v1784
    %1790 = vrot.lane.b32.xlu0 %v1786, 96
    %v1791 = vpop.permute.xlu0 %1790
    %1792 = vrot.lane.b32.xlu0 %v1787, 96
    %v1793 = vpop.permute.xlu0 %1792
    %v1796 = vsel %vm130, %v1791, 0.0
    %1797 = vadd.xlane.f32.xlu0 %v1796
    %v1798 = vpop.xlane.xlu0 %1797
    %v1799 = vsel %vm134, %v1793, 0.0
    %1800 = vadd.xlane.f32.xlu0 %v1799
    %v1801 = vpop.xlane.xlu0 %1800
    %v1802 = vmin.f32 %v1778, 0.0
    %v1803 = vmin.f32 %v1781, 0.0
    %v1804 = vand.u32 2147483647, %v1778
    %v1805 = vand.u32 2147483647, %v1781
    %v1806 = vsub.f32 0.0, %v1804
    %v1807 = vsub.f32 0.0, %v1805
    %v1808 = vmul.f32 %v1806, 1.442695
    %v1809 = vpow.pop %v1808
    %v1810 = vmul.f32 %v1807, 1.442695
    %v1811 = vpow.pop %v1810
    %v1812 = vadd.f32 %v1809, 1.0
    %v1813 = vlog2.pop %v1812
    %v1814 = vmul.f32 %v1813, 0.6931472
    %v1815 = vmul.f32 -0.5, %v1809
    %v1816 = vadd.f32 %v1815, 1.0
    %v1817 = vmul.f32 %v1816, %v1809
    %v1818 = vand.u32 2147483647, %v1809
    %vm1819 = vcmp.lt.f32.partialorder %v1818, 0.0004427343
    %v1820 = vsel %vm1819, %v1817, %v1814
    %v1821 = vadd.f32 %v1811, 1.0
    %v1822 = vlog2.pop %v1821
    %v1823 = vmul.f32 %v1822, 0.6931472
    %v1824 = vmul.f32 -0.5, %v1811
    %v1825 = vadd.f32 %v1824, 1.0
    %v1826 = vmul.f32 %v1825, %v1811
    %v1827 = vand.u32 2147483647, %v1811
    %vm1828 = vcmp.lt.f32.partialorder %v1827, 0.0004427343
    %v1829 = vsel %vm1828, %v1826, %v1823
    %v1830 = vsub.f32 %v1802, %v1820
    %v1831 = vsub.f32 %v1803, %v1829
    %vm1832 = vcmask 7168
    %v1833 = vsel %vm1832, %v1830, 0.0
    %vm1834 = vcmask 3072
    %v1835 = vsel %vm1834, %v1831, 0.0
    %v1836 = vadd.f32 %v1833, %v1835
    %1837 = vadd.xlane.f32.xlu0 %v1836
    %v1838 = vpop.xlane.xlu0 %1837
    %v1839 = vrot.slane %v1838, 4
    %v1840 = vadd.f32 %v1838, %v1839
    %v1841 = vrot.slane %v1840, 2
    %v1842 = vadd.f32 %v1840, %v1841
    %v1843 = vrot.slane %v1842, 1
    %v1844 = vadd.f32 %v1842, %v1843
    %s1845 = vtos %v1844
    %v1846 = vrcp.pop 12.0
    %s1847 = vtos %v1846
    %s1848 = smul.f32 %s1845, %s1847
    %s1849 = ssub.f32 0.0, %s1848
    %v1850 = vsub.f32 0.0, %v1798
    %v1851 = vsub.f32 0.0, %v1801
    %v1852 = vmin.f32 %v1850, 0.0
    %v1853 = vmin.f32 %v1851, 0.0
    %v1854 = vand.u32 2147483647, %v1850
    %v1855 = vand.u32 2147483647, %v1851
    %v1856 = vsub.f32 0.0, %v1854
    %v1857 = vsub.f32 0.0, %v1855
    %v1858 = vmul.f32 %v1856, 1.442695
    %v1859 = vpow.pop %v1858
    %v1860 = vmul.f32 %v1857, 1.442695
    %v1861 = vpow.pop %v1860
    %v1862 = vadd.f32 %v1859, 1.0
    %v1863 = vlog2.pop %v1862
    %v1864 = vmul.f32 %v1863, 0.6931472
    %v1865 = vmul.f32 -0.5, %v1859
    %v1866 = vadd.f32 %v1865, 1.0
    %v1867 = vmul.f32 %v1866, %v1859
    %v1868 = vand.u32 2147483647, %v1859
    %vm1869 = vcmp.lt.f32.partialorder %v1868, 0.0004427343
    %v1870 = vsel %vm1869, %v1867, %v1864
    %v1871 = vadd.f32 %v1861, 1.0
    %v1872 = vlog2.pop %v1871
    %v1873 = vmul.f32 %v1872, 0.6931472
    %v1874 = vmul.f32 -0.5, %v1861
    %v1875 = vadd.f32 %v1874, 1.0
    %v1876 = vmul.f32 %v1875, %v1861
    %v1877 = vand.u32 2147483647, %v1861
    %vm1878 = vcmp.lt.f32.partialorder %v1877, 0.0004427343
    %v1879 = vsel %vm1878, %v1876, %v1873
    %v1880 = vsub.f32 %v1852, %v1870
    %v1881 = vsub.f32 %v1853, %v1879
    %v1882 = vsel %vm1832, %v1880, 0.0
    %v1883 = vsel %vm1834, %v1881, 0.0
    %v1884 = vadd.f32 %v1882, %v1883
    %1885 = vadd.xlane.f32.xlu0 %v1884
    %v1886 = vpop.xlane.xlu0 %1885
    %v1887 = vrot.slane %v1886, 4
    %v1888 = vadd.f32 %v1886, %v1887
    %v1889 = vrot.slane %v1888, 2
    %v1890 = vadd.f32 %v1888, %v1889
    %v1891 = vrot.slane %v1890, 1
    %v1892 = vadd.f32 %v1890, %v1891
    %s1893 = vtos %v1892
    %v1894 = vrcp.pop 12.0
    %s1895 = vtos %v1894
    %s1896 = smul.f32 %s1893, %s1895
    %s1897 = ssub.f32 %s1849, %s1896
    %s1898 = sadd.f32 %s1897, 0.0
    %v1899 = vlaneseq
    %v1900 = vshrl.u32 %v1899, 7
    %v1901 = vsub.s32 0, %v1900
    %v1902 = vrot.slane %v1767, %v1901
    %v1903 = vmul.f32 %v1600, %v1902
    %v1904 = vmul.f32 %v1601, %v1902
    %v1905 = vsel %vm130, %v1903, 0.0
    %1906 = vadd.xlane.f32.xlu0 %v1905
    %v1907 = vpop.xlane.xlu0 %1906
    %v1908 = vsel %vm157, %v1904, 0.0
    %1909 = vadd.xlane.f32.xlu0 %v1908
    %v1910 = vpop.xlane.xlu0 %1909
    %1912 = vrot.lane.b32.xlu0 %v1902, 32
    %v1913 = vpop.permute.xlu0 %1912
    %v1915 = vmul.f32 %v1600, %v1913
    %v1916 = vmul.f32 %v1601, %v1913
    %1919 = vrot.lane.b32.xlu0 %v1915, 96
    %v1920 = vpop.permute.xlu0 %1919
    %1921 = vrot.lane.b32.xlu0 %v1916, 96
    %v1922 = vpop.permute.xlu0 %1921
    %v1925 = vsel %vm130, %v1920, 0.0
    %1926 = vadd.xlane.f32.xlu0 %v1925
    %v1927 = vpop.xlane.xlu0 %1926
    %v1928 = vsel %vm157, %v1922, 0.0
    %1929 = vadd.xlane.f32.xlu0 %v1928
    %v1930 = vpop.xlane.xlu0 %1929
    %v1931 = vmin.f32 %v1907, 0.0
    %v1932 = vmin.f32 %v1910, 0.0
    %v1933 = vand.u32 2147483647, %v1907
    %v1934 = vand.u32 2147483647, %v1910
    %v1935 = vsub.f32 0.0, %v1933
    %v1936 = vsub.f32 0.0, %v1934
    %v1937 = vmul.f32 %v1935, 1.442695
    %v1938 = vpow.pop %v1937
    %v1939 = vmul.f32 %v1936, 1.442695
    %v1940 = vpow.pop %v1939
    %v1941 = vadd.f32 %v1938, 1.0
    %v1942 = vlog2.pop %v1941
    %v1943 = vmul.f32 %v1942, 0.6931472
    %v1944 = vmul.f32 -0.5, %v1938
    %v1945 = vadd.f32 %v1944, 1.0
    %v1946 = vmul.f32 %v1945, %v1938
    %v1947 = vand.u32 2147483647, %v1938
    %vm1948 = vcmp.lt.f32.partialorder %v1947, 0.0004427343
    %v1949 = vsel %vm1948, %v1946, %v1943
    %v1950 = vadd.f32 %v1940, 1.0
    %v1951 = vlog2.pop %v1950
    %v1952 = vmul.f32 %v1951, 0.6931472
    %v1953 = vmul.f32 -0.5, %v1940
    %v1954 = vadd.f32 %v1953, 1.0
    %v1955 = vmul.f32 %v1954, %v1940
    %v1956 = vand.u32 2147483647, %v1940
    %vm1957 = vcmp.lt.f32.partialorder %v1956, 0.0004427343
    %v1958 = vsel %vm1957, %v1955, %v1952
    %v1959 = vsub.f32 %v1931, %v1949
    %v1960 = vsub.f32 %v1932, %v1958
    %v1961 = vsel %vm1832, %v1959, 0.0
    %vm1962 = vcmask 1024
    %v1963 = vsel %vm1962, %v1960, 0.0
    %v1964 = vadd.f32 %v1961, %v1963
    %1965 = vadd.xlane.f32.xlu0 %v1964
    %v1966 = vpop.xlane.xlu0 %1965
    %v1967 = vrot.slane %v1966, 4
    %v1968 = vadd.f32 %v1966, %v1967
    %v1969 = vrot.slane %v1968, 2
    %v1970 = vadd.f32 %v1968, %v1969
    %v1971 = vrot.slane %v1970, 1
    %v1972 = vadd.f32 %v1970, %v1971
    %s1973 = vtos %v1972
    %v1974 = vrcp.pop 10.0
    %s1975 = vtos %v1974
    %s1976 = smul.f32 %s1973, %s1975
    %s1977 = ssub.f32 0.0, %s1976
    %v1978 = vsub.f32 0.0, %v1927
    %v1979 = vsub.f32 0.0, %v1930
    %v1980 = vmin.f32 %v1978, 0.0
    %v1981 = vmin.f32 %v1979, 0.0
    %v1982 = vand.u32 2147483647, %v1978
    %v1983 = vand.u32 2147483647, %v1979
    %v1984 = vsub.f32 0.0, %v1982
    %v1985 = vsub.f32 0.0, %v1983
    %v1986 = vmul.f32 %v1984, 1.442695
    %v1987 = vpow.pop %v1986
    %v1988 = vmul.f32 %v1985, 1.442695
    %v1989 = vpow.pop %v1988
    %v1990 = vadd.f32 %v1987, 1.0
    %v1991 = vlog2.pop %v1990
    %v1992 = vmul.f32 %v1991, 0.6931472
    %v1993 = vmul.f32 -0.5, %v1987
    %v1994 = vadd.f32 %v1993, 1.0
    %v1995 = vmul.f32 %v1994, %v1987
    %v1996 = vand.u32 2147483647, %v1987
    %vm1997 = vcmp.lt.f32.partialorder %v1996, 0.0004427343
    %v1998 = vsel %vm1997, %v1995, %v1992
    %v1999 = vadd.f32 %v1989, 1.0
    %v2000 = vlog2.pop %v1999
    %v2001 = vmul.f32 %v2000, 0.6931472
    %v2002 = vmul.f32 -0.5, %v1989
    %v2003 = vadd.f32 %v2002, 1.0
    %v2004 = vmul.f32 %v2003, %v1989
    %v2005 = vand.u32 2147483647, %v1989
    %vm2006 = vcmp.lt.f32.partialorder %v2005, 0.0004427343
    %v2007 = vsel %vm2006, %v2004, %v2001
    %v2008 = vsub.f32 %v1980, %v1998
    %v2009 = vsub.f32 %v1981, %v2007
    %v2010 = vsel %vm1832, %v2008, 0.0
    %v2011 = vsel %vm1962, %v2009, 0.0
    %v2012 = vadd.f32 %v2010, %v2011
    %2013 = vadd.xlane.f32.xlu0 %v2012
    %v2014 = vpop.xlane.xlu0 %2013
    %v2015 = vrot.slane %v2014, 4
    %v2016 = vadd.f32 %v2014, %v2015
    %v2017 = vrot.slane %v2016, 2
    %v2018 = vadd.f32 %v2016, %v2017
    %v2019 = vrot.slane %v2018, 1
    %v2020 = vadd.f32 %v2018, %v2019
    %s2021 = vtos %v2020
    %v2022 = vrcp.pop 10.0
    %s2023 = vtos %v2022
    %s2024 = smul.f32 %s2021, %s2023
    %s2025 = ssub.f32 %s1977, %s2024
    %s2026 = sadd.f32 %s1898, %s2025
    %s2027 = scalar_lea.smem [#allocation2], 0
    %2028 = sst [smem:[%s2027]] %s2026
    %v2029 = vsel %vm508, %v1597, 0.0
    %vm2030 = vcmask 1041408
    %v2031 = vsel %vm2030, %v1601, 0.0
    %2034 = vrot.lane.b32.xlu0 %v1600, 32
    %v2035 = vpop.permute.xlu0 %2034
    %2036 = vrot.lane.b32.xlu0 %v2031, 32
    %v2037 = vpop.permute.xlu0 %2036
    %v2040 = vsel %vm130, %v1596, %v2035
    %v2041 = vsel %vm130, %v2029, %v2037
    %vm2042 = vcmask 523264
    %v2043 = vsel %vm2042, %v2040, 0.0
    %v2044 = vsel %vm2042, %v2041, 0.0
    %2045 = vst [vmem:[%s6] sm:$0xff] %v2043
    %2046 = vst [vmem:[%s6 + $0x8] sm:$0xff] %v2044
    // Predicated region
    $region22: #{dgi_hetero_forward.1} parent=1 // pred_check
      _
    $region23: #{dgi_hetero_forward.1} parent=1 // pred_check_branch
      %2048 = sbr.rel (0) target = $region25
    $region24: #{dgi_hetero_forward.1} parent=1 // pred_region
      %s2050 = ssub.s32 16, 16
      %2051 = vsyncadd [#allocation3], %s2050
      %2054 = dma.smem_to_hbm [#allocation2], 16, %s5, [#allocation3]
    $region25: #{dgi_hetero_forward.1} parent=1 // pred_fallthru
      _
    // Predicated region
    $region26: #{dgi_hetero_forward.1} parent=1 // pred_check
      _
    $region27: #{dgi_hetero_forward.1} parent=1 // pred_check_branch
      %2056 = sbr.rel (0) target = $region29
    $region28: #{dgi_hetero_forward.1} parent=1 // pred_region
      _
    $region29: #{dgi_hetero_forward.1} parent=1 // pred_fallthru
      _
    // Predicated region
    $region30: #{dgi_hetero_forward.1} parent=1 // pred_check
      _
    $region31: #{dgi_hetero_forward.1} parent=1 // pred_check_branch
      %2058 = sbr.rel (0) target = $region33
    $region32: #{dgi_hetero_forward.1} parent=1 // pred_region
      %2059 = dma.done [#allocation3], 16
    $region33: #{dgi_hetero_forward.1} parent=1 // pred_fallthru
      _
    // Predicated region
    $region34: #{dgi_hetero_forward.1} parent=1 // pred_check
      _
    $region35: #{dgi_hetero_forward.1} parent=1 // pred_check_branch
      %2061 = sbr.rel (0) target = $region37
    $region36: #{dgi_hetero_forward.1} parent=1 // pred_region
      _
    $region37: #{dgi_hetero_forward.1} parent=1 // pred_fallthru
      _
    %2062 = sfence
    %2063 = vsyncpa [#allocation3], 1

</llo_original>
